<compile_context>
chip_gen: v5e
topology: v5e:2x2
jax: 0.10.0
libtpu: 0.0.40
codegen_flags: <defaults>
</compile_context>

<pallas_src>
import numpy as np

import jax
import jax.numpy as jnp
from jax.experimental import pallas as pl
from jax.experimental.pallas import tpu as pltpu

_BN_EPS = 1e-5


def _round_up(v, m):
    return (v + m - 1) // m * m


def _make_xnet_kernel(T, height, width, nhw, nhwp, cp, kpad):
    """Build the fused T-block kernel for fixed static geometry."""
    offsets = [dy * width + dx for dy in (-1, 0, 1) for dx in (-1, 0, 1)]
    center = offsets.index(0)            # == 4; its mask row equals 'valid'
    pad_lanes = nhwp != nhw              # static: skip dead selects when False
    inv_n = 1.0 / float(nhw)

    def kernel(x_ref, mask_ref,
               w1_ref, b1_ref, g1_ref, be1_ref,
               w2_ref, b2_ref, g2_ref, be2_ref,
               out_ref, slab_ref):
        # The 3x3 taps only ever write slab rows [0, 9*cp); zero the K-padding
        # rows once so the MXU contraction never touches uninitialized VMEM.
        if kpad > 9 * cp:
            slab_ref[9 * cp:, :] = jnp.zeros((kpad - 9 * cp, nhwp), jnp.float32)

        def conv3x3(a, w_flat, b_col):
            # a: (cp, nhwp); w_flat: (cp, kpad) prepacked [co, k*cp+ci];
            # b_col: (cp, 1).  Stage the im2col slab in VMEM scratch from 9
            # XLU lane rotations + precomputed border masks, then one MXU dot.
            for k, off in enumerate(offsets):
                if off == 0:
                    ak = a
                else:
                    ak = pltpu.roll(a, (-off) % nhwp, axis=1)
                if off != 0 or pad_lanes:
                    ak = ak * mask_ref[k:k + 1, :]
                slab_ref[k * cp:(k + 1) * cp, :] = ak
            y = jnp.dot(w_flat, slab_ref[...],
                        preferred_element_type=jnp.float32)
            y = y + b_col
            if pad_lanes:
                y = y * mask_ref[center:center + 1, :]   # zero lane padding
            return y

        def batchnorm(y, g_col, be_col):
            # Training-mode BatchNorm2d: biased batch variance over (N, H, W),
            # one-pass sum / sum-of-squares, fused scale+shift.
            m = jnp.sum(y, axis=1, keepdims=True) * inv_n
            v = jnp.sum(y * y, axis=1, keepdims=True) * inv_n - m * m
            v = jnp.maximum(v, 0.0)
            scale = g_col * jax.lax.rsqrt(v + _BN_EPS)   # (cp, 1)
            shift = be_col - m * scale                   # (cp, 1)
            return y * scale + shift

        x = x_ref[...]                                   # (cp, nhwp)
        # Static T (=2): Python loop unrolls to straight-line code with static
        # parameter slices; use lax.fori_loop if T ever becomes large.
        for t in range(T):
            h1 = jnp.maximum(
                batchnorm(conv3x3(x, w1_ref[t], b1_ref[t]),
                          g1_ref[t], be1_ref[t]), 0.0)
            z2 = batchnorm(conv3x3(h1, w2_ref[t], b2_ref[t]),
                           g2_ref[t], be2_ref[t])
            x = jnp.maximum(x + z2, 0.0)                 # residual + ReLU
            if pad_lanes:
                x = x * mask_ref[center:center + 1, :]
        out_ref[...] = x

    return kernel


@jax.jit
def xnet_forward(x, params_list):
    """Xnet forward: all T fused residual blocks in a single pallas_call."""
    N, C, H, W = x.shape
    T = len(params_list)
    CP = _round_up(max(C, 1), 8)          # channels -> full sublane tile
    NHW = N * H * W
    NHWP = _round_up(NHW, 128)            # flat spatial -> full lane tiles
    KPAD = _round_up(9 * CP, 128)         # im2col contraction dim, MXU-aligned

    # Pack activations lane-dense: (C, N*H*W), p = n*H*W + h*W + w.
    xf = jnp.transpose(x, (1, 0, 2, 3)).reshape(C, NHW)
    xf = jnp.pad(xf, ((0, CP - C), (0, NHWP - NHW)))

    # Loop-invariant 3x3 border masks (+ lane-validity), built once on host.
    pos = np.arange(NHWP)
    hh = (pos // W) % H
    ww = pos % W
    valid = pos < NHW
    mrows = []
    for dy in (-1, 0, 1):
        for dx in (-1, 0, 1):
            m = ((hh + dy >= 0) & (hh + dy < H) &
                 (ww + dx >= 0) & (ww + dx < W) & valid)
            mrows.append(m.astype(np.float32))
    masks = jnp.asarray(np.stack(mrows))                       # (9, NHWP)

    def prep_w(w):
        # (C,C,3,3) -> (CP, KPAD) with [co, k*CP+ci], k = ky*3+kx (MXU-ready).
        wk = jnp.transpose(w, (2, 3, 0, 1)).reshape(9, C, C)   # [k, co, ci]
        wk = jnp.pad(wk, ((0, 0), (0, CP - C), (0, CP - C)))   # (9, CP, CP)
        wf = jnp.transpose(wk, (1, 0, 2)).reshape(CP, 9 * CP)  # [co, k*CP+ci]
        return jnp.pad(wf, ((0, 0), (0, KPAD - 9 * CP)))       # (CP, KPAD)

    def prep_v(v):                         # (C,) -> (CP, 1)
        return jnp.pad(v, (0, CP - C)).reshape(CP, 1)

    W1 = jnp.stack([prep_w(prm["w1"]) for prm in params_list])   # (T,CP,KPAD)
    W2 = jnp.stack([prep_w(prm["w2"]) for prm in params_list])
    B1 = jnp.stack([prep_v(prm["b1"]) for prm in params_list])   # (T,CP,1)
    B2 = jnp.stack([prep_v(prm["b2"]) for prm in params_list])
    G1 = jnp.stack([prep_v(prm["g1"]) for prm in params_list])
    G2 = jnp.stack([prep_v(prm["g2"]) for prm in params_list])
    BE1 = jnp.stack([prep_v(prm["be1"]) for prm in params_list])
    BE2 = jnp.stack([prep_v(prm["be2"]) for prm in params_list])

    out_flat = pl.pallas_call(
        _make_xnet_kernel(T, H, W, NHW, NHWP, CP, KPAD),
        out_shape=jax.ShapeDtypeStruct((CP, NHWP), jnp.float32),
        scratch_shapes=[pltpu.VMEM((KPAD, NHWP), jnp.float32)],  # im2col slab
        input_output_aliases={0: 0},
    )(xf, masks, W1, B1, G1, BE1, W2, B2, G2, BE2)

    out = out_flat[:C, :NHW].reshape(C, N, H, W)
    return jnp.transpose(out, (1, 0, 2, 3))


def xnet_reference(x, params_list):
    """Pure-JAX (non-Pallas) reference with PyTorch semantics."""
    def conv(a, w, b):
        y = jax.lax.conv_general_dilated(
            a, w, window_strides=(1, 1), padding=((1, 1), (1, 1)),
            dimension_numbers=("NCHW", "OIHW", "NCHW"),
            precision=jax.lax.Precision.HIGHEST)
        return y + b[None, :, None, None]

    def bn(y, g, be):
        m = jnp.mean(y, axis=(0, 2, 3), keepdims=True)
        v = jnp.mean((y - m) ** 2, axis=(0, 2, 3), keepdims=True)
        return ((y - m) / jnp.sqrt(v + _BN_EPS) * g[None, :, None, None]
                + be[None, :, None, None])

    X = x
    for p in params_list:
        h = jax.nn.relu(bn(conv(X, p["w1"], p["b1"]), p["g1"], p["be1"]))
        z = bn(conv(h, p["w2"], p["b2"]), p["g2"], p["be2"])
        X = jax.nn.relu(X + z)
    return X


def init_params(key, C, T):
    """Deterministic synthetic parameters matching the module's shapes."""
    params = []
    bound = 1.0 / np.sqrt(C * 3 * 3)       # PyTorch Conv2d default init bound
    for _ in range(T):
        key, k0, k1, k2, k3 = jax.random.split(key, 5)
        params.append(dict(
            w1=jax.random.uniform(k0, (C, C, 3, 3), jnp.float32, -bound, bound),
            b1=jax.random.uniform(k1, (C,), jnp.float32, -bound, bound),
            g1=jnp.ones((C,), jnp.float32),     # BatchNorm2d weight init
            be1=jnp.zeros((C,), jnp.float32),   # BatchNorm2d bias init
            w2=jax.random.uniform(k2, (C, C, 3, 3), jnp.float32, -bound, bound),
            b2=jax.random.uniform(k3, (C,), jnp.float32, -bound, bound),
            g2=jnp.ones((C,), jnp.float32),
            be2=jnp.zeros((C,), jnp.float32),
        ))
    return params


if __name__ == "__main__":
    # args.num_Q = 3 -> channels = 4 ; args.T = 2
    num_Q, T = 3, 2
    C = num_Q + 1
    N, H, W = 2, 16, 16

    key = jax.random.PRNGKey(0)
    kx, kp = jax.random.split(key)
    x = jax.random.normal(kx, (N, C, H, W), dtype=jnp.float32)
    params = init_params(kp, C, T)

    out = jax.block_until_ready(xnet_forward(x, params))

    assert out.shape == (N, C, H, W)
    assert out.dtype == jnp.float32
    assert bool(jnp.all(out >= 0.0))                # final ReLU
    assert bool(jnp.all(jnp.isfinite(out)))

    # Check against a pure-JAX reference of the PyTorch module.
    ref = jax.block_until_ready(xnet_reference(x, params))
    err = float(jnp.max(jnp.abs(out - ref)))
    assert err < 5e-3, f"Pallas kernel mismatch vs reference (max abs err {err:.3e})"

    print("KERNEL_OK")
</pallas_src>

<mosaic_0001>
module attributes {stable_mosaic.version = 11 : i64} {
  func.func @kernel(%arg0: memref<8x512xf32, #tpu.memory_space<vmem>>, %arg1: memref<9x512xf32, #tpu.memory_space<vmem>>, %arg2: memref<2x8x128xf32, #tpu.memory_space<vmem>>, %arg3: memref<2x8x1xf32, #tpu.memory_space<vmem>>, %arg4: memref<2x8x1xf32, #tpu.memory_space<vmem>>, %arg5: memref<2x8x1xf32, #tpu.memory_space<vmem>>, %arg6: memref<2x8x128xf32, #tpu.memory_space<vmem>>, %arg7: memref<2x8x1xf32, #tpu.memory_space<vmem>>, %arg8: memref<2x8x1xf32, #tpu.memory_space<vmem>>, %arg9: memref<2x8x1xf32, #tpu.memory_space<vmem>>, %arg10: memref<8x512xf32, #tpu.memory_space<vmem>>, %arg11: memref<128x512xf32, #tpu.memory_space<vmem>>) attributes {dimension_semantics = [], scalar_prefetch = 0 : i64, scratch_operands = 1 : i64, tpu.core_type = #tpu.core_type<tc>} {
    %cst = arith.constant 0.000000e+00 : f32
    %0 = vector.broadcast %cst : f32 to vector<56x512xf32>
    %c72 = arith.constant 72 : index
    %c0 = arith.constant 0 : index
    %1 = vector.load %arg11[%c72, %c0] : memref<128x512xf32, #tpu.memory_space<vmem>>, vector<56x512xf32>
    tpu.vector_store %arg11[%c72, %c0], %0 {strides = array<i32>} : memref<128x512xf32, #tpu.memory_space<vmem>>, vector<56x512xf32>,
    %c0_0 = arith.constant 0 : index
    %c0_1 = arith.constant 0 : index
    %2 = vector.load %arg0[%c0_0, %c0_1] : memref<8x512xf32, #tpu.memory_space<vmem>>, vector<8x512xf32>
    %c0_2 = arith.constant 0 : index
    %c0_3 = arith.constant 0 : index
    %c0_4 = arith.constant 0 : index
    %3 = vector.load %arg2[%c0_2, %c0_3, %c0_4] : memref<2x8x128xf32, #tpu.memory_space<vmem>>, vector<1x8x128xf32>
    %4 = vector.shape_cast %3 : vector<1x8x128xf32> to vector<8x128xf32>
    %c0_5 = arith.constant 0 : index
    %c0_6 = arith.constant 0 : index
    %c0_7 = arith.constant 0 : index
    %5 = vector.load %arg3[%c0_5, %c0_6, %c0_7] : memref<2x8x1xf32, #tpu.memory_space<vmem>>, vector<1x8x1xf32>
    %6 = vector.shape_cast %5 : vector<1x8x1xf32> to vector<8x1xf32>
    %c17_i32 = arith.constant 17 : i32
    %7 = tpu.dynamic_rotate %2 by %c17_i32 dim 1 : vector<8x512xf32>, i32 -> vector<8x512xf32>
    %c0_8 = arith.constant 0 : index
    %c0_9 = arith.constant 0 : index
    %8 = vector.load %arg1[%c0_8, %c0_9] : memref<9x512xf32, #tpu.memory_space<vmem>>, vector<1x512xf32>
    %9 = vector.broadcast %8 : vector<1x512xf32> to vector<8x512xf32>
    %10 = arith.mulf %7, %9 : vector<8x512xf32>
    %c0_10 = arith.constant 0 : index
    %c0_11 = arith.constant 0 : index
    %11 = vector.load %arg11[%c0_10, %c0_11] : memref<128x512xf32, #tpu.memory_space<vmem>>, vector<8x512xf32>
    tpu.vector_store %arg11[%c0_10, %c0_11], %10 {strides = array<i32>} : memref<128x512xf32, #tpu.memory_space<vmem>>, vector<8x512xf32>,
    %c16_i32 = arith.constant 16 : i32
    %12 = tpu.dynamic_rotate %2 by %c16_i32 dim 1 : vector<8x512xf32>, i32 -> vector<8x512xf32>
    %c1 = arith.constant 1 : index
    %c0_12 = arith.constant 0 : index
    %13 = vector.load %arg1[%c1, %c0_12] : memref<9x512xf32, #tpu.memory_space<vmem>>, vector<1x512xf32>
    %14 = vector.broadcast %13 : vector<1x512xf32> to vector<8x512xf32>
    %15 = arith.mulf %12, %14 : vector<8x512xf32>
    %c8 = arith.constant 8 : index
    %c0_13 = arith.constant 0 : index
    %16 = vector.load %arg11[%c8, %c0_13] : memref<128x512xf32, #tpu.memory_space<vmem>>, vector<8x512xf32>
    tpu.vector_store %arg11[%c8, %c0_13], %15 {strides = array<i32>} : memref<128x512xf32, #tpu.memory_space<vmem>>, vector<8x512xf32>,
    %c15_i32 = arith.constant 15 : i32
    %17 = tpu.dynamic_rotate %2 by %c15_i32 dim 1 : vector<8x512xf32>, i32 -> vector<8x512xf32>
    %c2 = arith.constant 2 : index
    %c0_14 = arith.constant 0 : index
    %18 = vector.load %arg1[%c2, %c0_14] : memref<9x512xf32, #tpu.memory_space<vmem>>, vector<1x512xf32>
    %19 = vector.broadcast %18 : vector<1x512xf32> to vector<8x512xf32>
    %20 = arith.mulf %17, %19 : vector<8x512xf32>
    %c16 = arith.constant 16 : index
    %c0_15 = arith.constant 0 : index
    %21 = vector.load %arg11[%c16, %c0_15] : memref<128x512xf32, #tpu.memory_space<vmem>>, vector<8x512xf32>
    tpu.vector_store %arg11[%c16, %c0_15], %20 {strides = array<i32>} : memref<128x512xf32, #tpu.memory_space<vmem>>, vector<8x512xf32>,
    %c1_i32 = arith.constant 1 : i32
    %22 = tpu.dynamic_rotate %2 by %c1_i32 dim 1 : vector<8x512xf32>, i32 -> vector<8x512xf32>
    %c3 = arith.constant 3 : index
    %c0_16 = arith.constant 0 : index
    %23 = vector.load %arg1[%c3, %c0_16] : memref<9x512xf32, #tpu.memory_space<vmem>>, vector<1x512xf32>
    %24 = vector.broadcast %23 : vector<1x512xf32> to vector<8x512xf32>
    %25 = arith.mulf %22, %24 : vector<8x512xf32>
    %c24 = arith.constant 24 : index
    %c0_17 = arith.constant 0 : index
    %26 = vector.load %arg11[%c24, %c0_17] : memref<128x512xf32, #tpu.memory_space<vmem>>, vector<8x512xf32>
    tpu.vector_store %arg11[%c24, %c0_17], %25 {strides = array<i32>} : memref<128x512xf32, #tpu.memory_space<vmem>>, vector<8x512xf32>,
    %c32 = arith.constant 32 : index
    %c0_18 = arith.constant 0 : index
    %27 = vector.load %arg11[%c32, %c0_18] : memref<128x512xf32, #tpu.memory_space<vmem>>, vector<8x512xf32>
    tpu.vector_store %arg11[%c32, %c0_18], %2 {strides = array<i32>} : memref<128x512xf32, #tpu.memory_space<vmem>>, vector<8x512xf32>,
    %c511_i32 = arith.constant 511 : i32
    %28 = tpu.dynamic_rotate %2 by %c511_i32 dim 1 : vector<8x512xf32>, i32 -> vector<8x512xf32>
    %c5 = arith.constant 5 : index
    %c0_19 = arith.constant 0 : index
    %29 = vector.load %arg1[%c5, %c0_19] : memref<9x512xf32, #tpu.memory_space<vmem>>, vector<1x512xf32>
    %30 = vector.broadcast %29 : vector<1x512xf32> to vector<8x512xf32>
    %31 = arith.mulf %28, %30 : vector<8x512xf32>
    %c40 = arith.constant 40 : index
    %c0_20 = arith.constant 0 : index
    %32 = vector.load %arg11[%c40, %c0_20] : memref<128x512xf32, #tpu.memory_space<vmem>>, vector<8x512xf32>
    tpu.vector_store %arg11[%c40, %c0_20], %31 {strides = array<i32>} : memref<128x512xf32, #tpu.memory_space<vmem>>, vector<8x512xf32>,
    %c497_i32 = arith.constant 497 : i32
    %33 = tpu.dynamic_rotate %2 by %c497_i32 dim 1 : vector<8x512xf32>, i32 -> vector<8x512xf32>
    %c6 = arith.constant 6 : index
    %c0_21 = arith.constant 0 : index
    %34 = vector.load %arg1[%c6, %c0_21] : memref<9x512xf32, #tpu.memory_space<vmem>>, vector<1x512xf32>
    %35 = vector.broadcast %34 : vector<1x512xf32> to vector<8x512xf32>
    %36 = arith.mulf %33, %35 : vector<8x512xf32>
    %c48 = arith.constant 48 : index
    %c0_22 = arith.constant 0 : index
    %37 = vector.load %arg11[%c48, %c0_22] : memref<128x512xf32, #tpu.memory_space<vmem>>, vector<8x512xf32>
    tpu.vector_store %arg11[%c48, %c0_22], %36 {strides = array<i32>} : memref<128x512xf32, #tpu.memory_space<vmem>>, vector<8x512xf32>,
    %c496_i32 = arith.constant 496 : i32
    %38 = tpu.dynamic_rotate %2 by %c496_i32 dim 1 : vector<8x512xf32>, i32 -> vector<8x512xf32>
    %c7 = arith.constant 7 : index
    %c0_23 = arith.constant 0 : index
    %39 = vector.load %arg1[%c7, %c0_23] : memref<9x512xf32, #tpu.memory_space<vmem>>, vector<1x512xf32>
    %40 = vector.broadcast %39 : vector<1x512xf32> to vector<8x512xf32>
    %41 = arith.mulf %38, %40 : vector<8x512xf32>
    %c56 = arith.constant 56 : index
    %c0_24 = arith.constant 0 : index
    %42 = vector.load %arg11[%c56, %c0_24] : memref<128x512xf32, #tpu.memory_space<vmem>>, vector<8x512xf32>
    tpu.vector_store %arg11[%c56, %c0_24], %41 {strides = array<i32>} : memref<128x512xf32, #tpu.memory_space<vmem>>, vector<8x512xf32>,
    %c495_i32 = arith.constant 495 : i32
    %43 = tpu.dynamic_rotate %2 by %c495_i32 dim 1 : vector<8x512xf32>, i32 -> vector<8x512xf32>
    %c8_25 = arith.constant 8 : index
    %c0_26 = arith.constant 0 : index
    %44 = vector.load %arg1[%c8_25, %c0_26] : memref<9x512xf32, #tpu.memory_space<vmem>>, vector<1x512xf32>
    %45 = vector.broadcast %44 : vector<1x512xf32> to vector<8x512xf32>
    %46 = arith.mulf %43, %45 : vector<8x512xf32>
    %c64 = arith.constant 64 : index
    %c0_27 = arith.constant 0 : index
    %47 = vector.load %arg11[%c64, %c0_27] : memref<128x512xf32, #tpu.memory_space<vmem>>, vector<8x512xf32>
    tpu.vector_store %arg11[%c64, %c0_27], %46 {strides = array<i32>} : memref<128x512xf32, #tpu.memory_space<vmem>>, vector<8x512xf32>,
    %c0_28 = arith.constant 0 : index
    %c0_29 = arith.constant 0 : index
    %48 = vector.load %arg11[%c0_28, %c0_29] : memref<128x512xf32, #tpu.memory_space<vmem>>, vector<128x512xf32>
    %cst_30 = arith.constant dense<0.000000e+00> : vector<8x512xf32>
    %49 = tpu.matmul %4, %48, %cst_30 {dimension_numbers = #tpu.dot_dimension_numbers<[1], [0], [0], [1], [0, 0, 1, 1], [], []>} : vector<8x128xf32>, vector<128x512xf32>, vector<8x512xf32> -> vector<8x512xf32>
    %50 = vector.broadcast %6 : vector<8x1xf32> to vector<8x512xf32>
    %51 = arith.addf %49, %50 : vector<8x512xf32>
    %c0_31 = arith.constant 0 : index
    %c0_32 = arith.constant 0 : index
    %c0_33 = arith.constant 0 : index
    %52 = vector.load %arg4[%c0_31, %c0_32, %c0_33] : memref<2x8x1xf32, #tpu.memory_space<vmem>>, vector<1x8x1xf32>
    %53 = vector.shape_cast %52 : vector<1x8x1xf32> to vector<8x1xf32>
    %c0_34 = arith.constant 0 : index
    %c0_35 = arith.constant 0 : index
    %c0_36 = arith.constant 0 : index
    %54 = vector.load %arg5[%c0_34, %c0_35, %c0_36] : memref<2x8x1xf32, #tpu.memory_space<vmem>>, vector<1x8x1xf32>
    %55 = vector.shape_cast %54 : vector<1x8x1xf32> to vector<8x1xf32>
    %cst_37 = arith.constant dense<0.000000e+00> : vector<8xf32>
    %56 = vector.multi_reduction <add>, %51, %cst_37 [1] : vector<8x512xf32> to vector<8xf32>
    %57 = vector.shape_cast %56 : vector<8xf32> to vector<8x1xf32>
    %cst_38 = arith.constant 0.001953125 : f32
    %58 = vector.broadcast %cst_38 : f32 to vector<8x1xf32>
    %59 = arith.mulf %57, %58 : vector<8x1xf32>
    %60 = arith.mulf %51, %51 : vector<8x512xf32>
    %cst_39 = arith.constant dense<0.000000e+00> : vector<8xf32>
    %61 = vector.multi_reduction <add>, %60, %cst_39 [1] : vector<8x512xf32> to vector<8xf32>
    %62 = vector.shape_cast %61 : vector<8xf32> to vector<8x1xf32>
    %cst_40 = arith.constant 0.001953125 : f32
    %63 = vector.broadcast %cst_40 : f32 to vector<8x1xf32>
    %64 = arith.mulf %62, %63 : vector<8x1xf32>
    %65 = arith.mulf %59, %59 : vector<8x1xf32>
    %66 = arith.subf %64, %65 : vector<8x1xf32>
    %cst_41 = arith.constant 0.000000e+00 : f32
    %67 = vector.broadcast %cst_41 : f32 to vector<8x1xf32>
    %68 = arith.maximumf %66, %67 : vector<8x1xf32>
    %cst_42 = arith.constant 9.99999974E-6 : f32
    %69 = vector.broadcast %cst_42 : f32 to vector<8x1xf32>
    %70 = arith.addf %68, %69 : vector<8x1xf32>
    %71 = math.rsqrt %70 : vector<8x1xf32>
    %72 = arith.mulf %53, %71 : vector<8x1xf32>
    %73 = arith.mulf %59, %72 : vector<8x1xf32>
    %74 = arith.subf %55, %73 : vector<8x1xf32>
    %75 = vector.broadcast %72 : vector<8x1xf32> to vector<8x512xf32>
    %76 = arith.mulf %51, %75 : vector<8x512xf32>
    %77 = vector.broadcast %74 : vector<8x1xf32> to vector<8x512xf32>
    %78 = arith.addf %76, %77 : vector<8x512xf32>
    %cst_43 = arith.constant 0.000000e+00 : f32
    %79 = vector.broadcast %cst_43 : f32 to vector<8x512xf32>
    %80 = arith.maximumf %78, %79 : vector<8x512xf32>
    %c0_44 = arith.constant 0 : index
    %c0_45 = arith.constant 0 : index
    %c0_46 = arith.constant 0 : index
    %81 = vector.load %arg6[%c0_44, %c0_45, %c0_46] : memref<2x8x128xf32, #tpu.memory_space<vmem>>, vector<1x8x128xf32>
    %82 = vector.shape_cast %81 : vector<1x8x128xf32> to vector<8x128xf32>
    %c0_47 = arith.constant 0 : index
    %c0_48 = arith.constant 0 : index
    %c0_49 = arith.constant 0 : index
    %83 = vector.load %arg7[%c0_47, %c0_48, %c0_49] : memref<2x8x1xf32, #tpu.memory_space<vmem>>, vector<1x8x1xf32>
    %84 = vector.shape_cast %83 : vector<1x8x1xf32> to vector<8x1xf32>
    %c17_i32_50 = arith.constant 17 : i32
    %85 = tpu.dynamic_rotate %80 by %c17_i32_50 dim 1 : vector<8x512xf32>, i32 -> vector<8x512xf32>
    %c0_51 = arith.constant 0 : index
    %c0_52 = arith.constant 0 : index
    %86 = vector.load %arg1[%c0_51, %c0_52] : memref<9x512xf32, #tpu.memory_space<vmem>>, vector<1x512xf32>
    %87 = vector.broadcast %86 : vector<1x512xf32> to vector<8x512xf32>
    %88 = arith.mulf %85, %87 : vector<8x512xf32>
    %c0_53 = arith.constant 0 : index
    %c0_54 = arith.constant 0 : index
    %89 = vector.load %arg11[%c0_53, %c0_54] : memref<128x512xf32, #tpu.memory_space<vmem>>, vector<8x512xf32>
    tpu.vector_store %arg11[%c0_53, %c0_54], %88 {strides = array<i32>} : memref<128x512xf32, #tpu.memory_space<vmem>>, vector<8x512xf32>,
    %c16_i32_55 = arith.constant 16 : i32
    %90 = tpu.dynamic_rotate %80 by %c16_i32_55 dim 1 : vector<8x512xf32>, i32 -> vector<8x512xf32>
    %c1_56 = arith.constant 1 : index
    %c0_57 = arith.constant 0 : index
    %91 = vector.load %arg1[%c1_56, %c0_57] : memref<9x512xf32, #tpu.memory_space<vmem>>, vector<1x512xf32>
    %92 = vector.broadcast %91 : vector<1x512xf32> to vector<8x512xf32>
    %93 = arith.mulf %90, %92 : vector<8x512xf32>
    %c8_58 = arith.constant 8 : index
    %c0_59 = arith.constant 0 : index
    %94 = vector.load %arg11[%c8_58, %c0_59] : memref<128x512xf32, #tpu.memory_space<vmem>>, vector<8x512xf32>
    tpu.vector_store %arg11[%c8_58, %c0_59], %93 {strides = array<i32>} : memref<128x512xf32, #tpu.memory_space<vmem>>, vector<8x512xf32>,
    %c15_i32_60 = arith.constant 15 : i32
    %95 = tpu.dynamic_rotate %80 by %c15_i32_60 dim 1 : vector<8x512xf32>, i32 -> vector<8x512xf32>
    %c2_61 = arith.constant 2 : index
    %c0_62 = arith.constant 0 : index
    %96 = vector.load %arg1[%c2_61, %c0_62] : memref<9x512xf32, #tpu.memory_space<vmem>>, vector<1x512xf32>
    %97 = vector.broadcast %96 : vector<1x512xf32> to vector<8x512xf32>
    %98 = arith.mulf %95, %97 : vector<8x512xf32>
    %c16_63 = arith.constant 16 : index
    %c0_64 = arith.constant 0 : index
    %99 = vector.load %arg11[%c16_63, %c0_64] : memref<128x512xf32, #tpu.memory_space<vmem>>, vector<8x512xf32>
    tpu.vector_store %arg11[%c16_63, %c0_64], %98 {strides = array<i32>} : memref<128x512xf32, #tpu.memory_space<vmem>>, vector<8x512xf32>,
    %c1_i32_65 = arith.constant 1 : i32
    %100 = tpu.dynamic_rotate %80 by %c1_i32_65 dim 1 : vector<8x512xf32>, i32 -> vector<8x512xf32>
    %c3_66 = arith.constant 3 : index
    %c0_67 = arith.constant 0 : index
    %101 = vector.load %arg1[%c3_66, %c0_67] : memref<9x512xf32, #tpu.memory_space<vmem>>, vector<1x512xf32>
    %102 = vector.broadcast %101 : vector<1x512xf32> to vector<8x512xf32>
    %103 = arith.mulf %100, %102 : vector<8x512xf32>
    %c24_68 = arith.constant 24 : index
    %c0_69 = arith.constant 0 : index
    %104 = vector.load %arg11[%c24_68, %c0_69] : memref<128x512xf32, #tpu.memory_space<vmem>>, vector<8x512xf32>
    tpu.vector_store %arg11[%c24_68, %c0_69], %103 {strides = array<i32>} : memref<128x512xf32, #tpu.memory_space<vmem>>, vector<8x512xf32>,
    %c32_70 = arith.constant 32 : index
    %c0_71 = arith.constant 0 : index
    %105 = vector.load %arg11[%c32_70, %c0_71] : memref<128x512xf32, #tpu.memory_space<vmem>>, vector<8x512xf32>
    tpu.vector_store %arg11[%c32_70, %c0_71], %80 {strides = array<i32>} : memref<128x512xf32, #tpu.memory_space<vmem>>, vector<8x512xf32>,
    %c511_i32_72 = arith.constant 511 : i32
    %106 = tpu.dynamic_rotate %80 by %c511_i32_72 dim 1 : vector<8x512xf32>, i32 -> vector<8x512xf32>
    %c5_73 = arith.constant 5 : index
    %c0_74 = arith.constant 0 : index
    %107 = vector.load %arg1[%c5_73, %c0_74] : memref<9x512xf32, #tpu.memory_space<vmem>>, vector<1x512xf32>
    %108 = vector.broadcast %107 : vector<1x512xf32> to vector<8x512xf32>
    %109 = arith.mulf %106, %108 : vector<8x512xf32>
    %c40_75 = arith.constant 40 : index
    %c0_76 = arith.constant 0 : index
    %110 = vector.load %arg11[%c40_75, %c0_76] : memref<128x512xf32, #tpu.memory_space<vmem>>, vector<8x512xf32>
    tpu.vector_store %arg11[%c40_75, %c0_76], %109 {strides = array<i32>} : memref<128x512xf32, #tpu.memory_space<vmem>>, vector<8x512xf32>,
    %c497_i32_77 = arith.constant 497 : i32
    %111 = tpu.dynamic_rotate %80 by %c497_i32_77 dim 1 : vector<8x512xf32>, i32 -> vector<8x512xf32>
    %c6_78 = arith.constant 6 : index
    %c0_79 = arith.constant 0 : index
    %112 = vector.load %arg1[%c6_78, %c0_79] : memref<9x512xf32, #tpu.memory_space<vmem>>, vector<1x512xf32>
    %113 = vector.broadcast %112 : vector<1x512xf32> to vector<8x512xf32>
    %114 = arith.mulf %111, %113 : vector<8x512xf32>
    %c48_80 = arith.constant 48 : index
    %c0_81 = arith.constant 0 : index
    %115 = vector.load %arg11[%c48_80, %c0_81] : memref<128x512xf32, #tpu.memory_space<vmem>>, vector<8x512xf32>
    tpu.vector_store %arg11[%c48_80, %c0_81], %114 {strides = array<i32>} : memref<128x512xf32, #tpu.memory_space<vmem>>, vector<8x512xf32>,
    %c496_i32_82 = arith.constant 496 : i32
    %116 = tpu.dynamic_rotate %80 by %c496_i32_82 dim 1 : vector<8x512xf32>, i32 -> vector<8x512xf32>
    %c7_83 = arith.constant 7 : index
    %c0_84 = arith.constant 0 : index
    %117 = vector.load %arg1[%c7_83, %c0_84] : memref<9x512xf32, #tpu.memory_space<vmem>>, vector<1x512xf32>
    %118 = vector.broadcast %117 : vector<1x512xf32> to vector<8x512xf32>
    %119 = arith.mulf %116, %118 : vector<8x512xf32>
    %c56_85 = arith.constant 56 : index
    %c0_86 = arith.constant 0 : index
    %120 = vector.load %arg11[%c56_85, %c0_86] : memref<128x512xf32, #tpu.memory_space<vmem>>, vector<8x512xf32>
    tpu.vector_store %arg11[%c56_85, %c0_86], %119 {strides = array<i32>} : memref<128x512xf32, #tpu.memory_space<vmem>>, vector<8x512xf32>,
    %c495_i32_87 = arith.constant 495 : i32
    %121 = tpu.dynamic_rotate %80 by %c495_i32_87 dim 1 : vector<8x512xf32>, i32 -> vector<8x512xf32>
    %c8_88 = arith.constant 8 : index
    %c0_89 = arith.constant 0 : index
    %122 = vector.load %arg1[%c8_88, %c0_89] : memref<9x512xf32, #tpu.memory_space<vmem>>, vector<1x512xf32>
    %123 = vector.broadcast %122 : vector<1x512xf32> to vector<8x512xf32>
    %124 = arith.mulf %121, %123 : vector<8x512xf32>
    %c64_90 = arith.constant 64 : index
    %c0_91 = arith.constant 0 : index
    %125 = vector.load %arg11[%c64_90, %c0_91] : memref<128x512xf32, #tpu.memory_space<vmem>>, vector<8x512xf32>
    tpu.vector_store %arg11[%c64_90, %c0_91], %124 {strides = array<i32>} : memref<128x512xf32, #tpu.memory_space<vmem>>, vector<8x512xf32>,
    %c0_92 = arith.constant 0 : index
    %c0_93 = arith.constant 0 : index
    %126 = vector.load %arg11[%c0_92, %c0_93] : memref<128x512xf32, #tpu.memory_space<vmem>>, vector<128x512xf32>
    %cst_94 = arith.constant dense<0.000000e+00> : vector<8x512xf32>
    %127 = tpu.matmul %82, %126, %cst_94 {dimension_numbers = #tpu.dot_dimension_numbers<[1], [0], [0], [1], [0, 0, 1, 1], [], []>} : vector<8x128xf32>, vector<128x512xf32>, vector<8x512xf32> -> vector<8x512xf32>
    %128 = vector.broadcast %84 : vector<8x1xf32> to vector<8x512xf32>
    %129 = arith.addf %127, %128 : vector<8x512xf32>
    %c0_95 = arith.constant 0 : index
    %c0_96 = arith.constant 0 : index
    %c0_97 = arith.constant 0 : index
    %130 = vector.load %arg8[%c0_95, %c0_96, %c0_97] : memref<2x8x1xf32, #tpu.memory_space<vmem>>, vector<1x8x1xf32>
    %131 = vector.shape_cast %130 : vector<1x8x1xf32> to vector<8x1xf32>
    %c0_98 = arith.constant 0 : index
    %c0_99 = arith.constant 0 : index
    %c0_100 = arith.constant 0 : index
    %132 = vector.load %arg9[%c0_98, %c0_99, %c0_100] : memref<2x8x1xf32, #tpu.memory_space<vmem>>, vector<1x8x1xf32>
    %133 = vector.shape_cast %132 : vector<1x8x1xf32> to vector<8x1xf32>
    %cst_101 = arith.constant dense<0.000000e+00> : vector<8xf32>
    %134 = vector.multi_reduction <add>, %129, %cst_101 [1] : vector<8x512xf32> to vector<8xf32>
    %135 = vector.shape_cast %134 : vector<8xf32> to vector<8x1xf32>
    %cst_102 = arith.constant 0.001953125 : f32
    %136 = vector.broadcast %cst_102 : f32 to vector<8x1xf32>
    %137 = arith.mulf %135, %136 : vector<8x1xf32>
    %138 = arith.mulf %129, %129 : vector<8x512xf32>
    %cst_103 = arith.constant dense<0.000000e+00> : vector<8xf32>
    %139 = vector.multi_reduction <add>, %138, %cst_103 [1] : vector<8x512xf32> to vector<8xf32>
    %140 = vector.shape_cast %139 : vector<8xf32> to vector<8x1xf32>
    %cst_104 = arith.constant 0.001953125 : f32
    %141 = vector.broadcast %cst_104 : f32 to vector<8x1xf32>
    %142 = arith.mulf %140, %141 : vector<8x1xf32>
    %143 = arith.mulf %137, %137 : vector<8x1xf32>
    %144 = arith.subf %142, %143 : vector<8x1xf32>
    %cst_105 = arith.constant 0.000000e+00 : f32
    %145 = vector.broadcast %cst_105 : f32 to vector<8x1xf32>
    %146 = arith.maximumf %144, %145 : vector<8x1xf32>
    %cst_106 = arith.constant 9.99999974E-6 : f32
    %147 = vector.broadcast %cst_106 : f32 to vector<8x1xf32>
    %148 = arith.addf %146, %147 : vector<8x1xf32>
    %149 = math.rsqrt %148 : vector<8x1xf32>
    %150 = arith.mulf %131, %149 : vector<8x1xf32>
    %151 = arith.mulf %137, %150 : vector<8x1xf32>
    %152 = arith.subf %133, %151 : vector<8x1xf32>
    %153 = vector.broadcast %150 : vector<8x1xf32> to vector<8x512xf32>
    %154 = arith.mulf %129, %153 : vector<8x512xf32>
    %155 = vector.broadcast %152 : vector<8x1xf32> to vector<8x512xf32>
    %156 = arith.addf %154, %155 : vector<8x512xf32>
    %157 = arith.addf %2, %156 : vector<8x512xf32>
    %cst_107 = arith.constant 0.000000e+00 : f32
    %158 = vector.broadcast %cst_107 : f32 to vector<8x512xf32>
    %159 = arith.maximumf %157, %158 : vector<8x512xf32>
    %c1_108 = arith.constant 1 : index
    %c0_109 = arith.constant 0 : index
    %c0_110 = arith.constant 0 : index
    %160 = vector.load %arg2[%c1_108, %c0_109, %c0_110] : memref<2x8x128xf32, #tpu.memory_space<vmem>>, vector<1x8x128xf32>
    %161 = vector.shape_cast %160 : vector<1x8x128xf32> to vector<8x128xf32>
    %c1_111 = arith.constant 1 : index
    %c0_112 = arith.constant 0 : index
    %c0_113 = arith.constant 0 : index
    %162 = vector.load %arg3[%c1_111, %c0_112, %c0_113] : memref<2x8x1xf32, #tpu.memory_space<vmem>>, vector<1x8x1xf32>
    %163 = vector.shape_cast %162 : vector<1x8x1xf32> to vector<8x1xf32>
    %c17_i32_114 = arith.constant 17 : i32
    %164 = tpu.dynamic_rotate %159 by %c17_i32_114 dim 1 : vector<8x512xf32>, i32 -> vector<8x512xf32>
    %c0_115 = arith.constant 0 : index
    %c0_116 = arith.constant 0 : index
    %165 = vector.load %arg1[%c0_115, %c0_116] : memref<9x512xf32, #tpu.memory_space<vmem>>, vector<1x512xf32>
    %166 = vector.broadcast %165 : vector<1x512xf32> to vector<8x512xf32>
    %167 = arith.mulf %164, %166 : vector<8x512xf32>
    %c0_117 = arith.constant 0 : index
    %c0_118 = arith.constant 0 : index
    %168 = vector.load %arg11[%c0_117, %c0_118] : memref<128x512xf32, #tpu.memory_space<vmem>>, vector<8x512xf32>
    tpu.vector_store %arg11[%c0_117, %c0_118], %167 {strides = array<i32>} : memref<128x512xf32, #tpu.memory_space<vmem>>, vector<8x512xf32>,
    %c16_i32_119 = arith.constant 16 : i32
    %169 = tpu.dynamic_rotate %159 by %c16_i32_119 dim 1 : vector<8x512xf32>, i32 -> vector<8x512xf32>
    %c1_120 = arith.constant 1 : index
    %c0_121 = arith.constant 0 : index
    %170 = vector.load %arg1[%c1_120, %c0_121] : memref<9x512xf32, #tpu.memory_space<vmem>>, vector<1x512xf32>
    %171 = vector.broadcast %170 : vector<1x512xf32> to vector<8x512xf32>
    %172 = arith.mulf %169, %171 : vector<8x512xf32>
    %c8_122 = arith.constant 8 : index
    %c0_123 = arith.constant 0 : index
    %173 = vector.load %arg11[%c8_122, %c0_123] : memref<128x512xf32, #tpu.memory_space<vmem>>, vector<8x512xf32>
    tpu.vector_store %arg11[%c8_122, %c0_123], %172 {strides = array<i32>} : memref<128x512xf32, #tpu.memory_space<vmem>>, vector<8x512xf32>,
    %c15_i32_124 = arith.constant 15 : i32
    %174 = tpu.dynamic_rotate %159 by %c15_i32_124 dim 1 : vector<8x512xf32>, i32 -> vector<8x512xf32>
    %c2_125 = arith.constant 2 : index
    %c0_126 = arith.constant 0 : index
    %175 = vector.load %arg1[%c2_125, %c0_126] : memref<9x512xf32, #tpu.memory_space<vmem>>, vector<1x512xf32>
    %176 = vector.broadcast %175 : vector<1x512xf32> to vector<8x512xf32>
    %177 = arith.mulf %174, %176 : vector<8x512xf32>
    %c16_127 = arith.constant 16 : index
    %c0_128 = arith.constant 0 : index
    %178 = vector.load %arg11[%c16_127, %c0_128] : memref<128x512xf32, #tpu.memory_space<vmem>>, vector<8x512xf32>
    tpu.vector_store %arg11[%c16_127, %c0_128], %177 {strides = array<i32>} : memref<128x512xf32, #tpu.memory_space<vmem>>, vector<8x512xf32>,
    %c1_i32_129 = arith.constant 1 : i32
    %179 = tpu.dynamic_rotate %159 by %c1_i32_129 dim 1 : vector<8x512xf32>, i32 -> vector<8x512xf32>
    %c3_130 = arith.constant 3 : index
    %c0_131 = arith.constant 0 : index
    %180 = vector.load %arg1[%c3_130, %c0_131] : memref<9x512xf32, #tpu.memory_space<vmem>>, vector<1x512xf32>
    %181 = vector.broadcast %180 : vector<1x512xf32> to vector<8x512xf32>
    %182 = arith.mulf %179, %181 : vector<8x512xf32>
    %c24_132 = arith.constant 24 : index
    %c0_133 = arith.constant 0 : index
    %183 = vector.load %arg11[%c24_132, %c0_133] : memref<128x512xf32, #tpu.memory_space<vmem>>, vector<8x512xf32>
    tpu.vector_store %arg11[%c24_132, %c0_133], %182 {strides = array<i32>} : memref<128x512xf32, #tpu.memory_space<vmem>>, vector<8x512xf32>,
    %c32_134 = arith.constant 32 : index
    %c0_135 = arith.constant 0 : index
    %184 = vector.load %arg11[%c32_134, %c0_135] : memref<128x512xf32, #tpu.memory_space<vmem>>, vector<8x512xf32>
    tpu.vector_store %arg11[%c32_134, %c0_135], %159 {strides = array<i32>} : memref<128x512xf32, #tpu.memory_space<vmem>>, vector<8x512xf32>,
    %c511_i32_136 = arith.constant 511 : i32
    %185 = tpu.dynamic_rotate %159 by %c511_i32_136 dim 1 : vector<8x512xf32>, i32 -> vector<8x512xf32>
    %c5_137 = arith.constant 5 : index
    %c0_138 = arith.constant 0 : index
    %186 = vector.load %arg1[%c5_137, %c0_138] : memref<9x512xf32, #tpu.memory_space<vmem>>, vector<1x512xf32>
    %187 = vector.broadcast %186 : vector<1x512xf32> to vector<8x512xf32>
    %188 = arith.mulf %185, %187 : vector<8x512xf32>
    %c40_139 = arith.constant 40 : index
    %c0_140 = arith.constant 0 : index
    %189 = vector.load %arg11[%c40_139, %c0_140] : memref<128x512xf32, #tpu.memory_space<vmem>>, vector<8x512xf32>
    tpu.vector_store %arg11[%c40_139, %c0_140], %188 {strides = array<i32>} : memref<128x512xf32, #tpu.memory_space<vmem>>, vector<8x512xf32>,
    %c497_i32_141 = arith.constant 497 : i32
    %190 = tpu.dynamic_rotate %159 by %c497_i32_141 dim 1 : vector<8x512xf32>, i32 -> vector<8x512xf32>
    %c6_142 = arith.constant 6 : index
    %c0_143 = arith.constant 0 : index
    %191 = vector.load %arg1[%c6_142, %c0_143] : memref<9x512xf32, #tpu.memory_space<vmem>>, vector<1x512xf32>
    %192 = vector.broadcast %191 : vector<1x512xf32> to vector<8x512xf32>
    %193 = arith.mulf %190, %192 : vector<8x512xf32>
    %c48_144 = arith.constant 48 : index
    %c0_145 = arith.constant 0 : index
    %194 = vector.load %arg11[%c48_144, %c0_145] : memref<128x512xf32, #tpu.memory_space<vmem>>, vector<8x512xf32>
    tpu.vector_store %arg11[%c48_144, %c0_145], %193 {strides = array<i32>} : memref<128x512xf32, #tpu.memory_space<vmem>>, vector<8x512xf32>,
    %c496_i32_146 = arith.constant 496 : i32
    %195 = tpu.dynamic_rotate %159 by %c496_i32_146 dim 1 : vector<8x512xf32>, i32 -> vector<8x512xf32>
    %c7_147 = arith.constant 7 : index
    %c0_148 = arith.constant 0 : index
    %196 = vector.load %arg1[%c7_147, %c0_148] : memref<9x512xf32, #tpu.memory_space<vmem>>, vector<1x512xf32>
    %197 = vector.broadcast %196 : vector<1x512xf32> to vector<8x512xf32>
    %198 = arith.mulf %195, %197 : vector<8x512xf32>
    %c56_149 = arith.constant 56 : index
    %c0_150 = arith.constant 0 : index
    %199 = vector.load %arg11[%c56_149, %c0_150] : memref<128x512xf32, #tpu.memory_space<vmem>>, vector<8x512xf32>
    tpu.vector_store %arg11[%c56_149, %c0_150], %198 {strides = array<i32>} : memref<128x512xf32, #tpu.memory_space<vmem>>, vector<8x512xf32>,
    %c495_i32_151 = arith.constant 495 : i32
    %200 = tpu.dynamic_rotate %159 by %c495_i32_151 dim 1 : vector<8x512xf32>, i32 -> vector<8x512xf32>
    %c8_152 = arith.constant 8 : index
    %c0_153 = arith.constant 0 : index
    %201 = vector.load %arg1[%c8_152, %c0_153] : memref<9x512xf32, #tpu.memory_space<vmem>>, vector<1x512xf32>
    %202 = vector.broadcast %201 : vector<1x512xf32> to vector<8x512xf32>
    %203 = arith.mulf %200, %202 : vector<8x512xf32>
    %c64_154 = arith.constant 64 : index
    %c0_155 = arith.constant 0 : index
    %204 = vector.load %arg11[%c64_154, %c0_155] : memref<128x512xf32, #tpu.memory_space<vmem>>, vector<8x512xf32>
    tpu.vector_store %arg11[%c64_154, %c0_155], %203 {strides = array<i32>} : memref<128x512xf32, #tpu.memory_space<vmem>>, vector<8x512xf32>,
    %c0_156 = arith.constant 0 : index
    %c0_157 = arith.constant 0 : index
    %205 = vector.load %arg11[%c0_156, %c0_157] : memref<128x512xf32, #tpu.memory_space<vmem>>, vector<128x512xf32>
    %cst_158 = arith.constant dense<0.000000e+00> : vector<8x512xf32>
    %206 = tpu.matmul %161, %205, %cst_158 {dimension_numbers = #tpu.dot_dimension_numbers<[1], [0], [0], [1], [0, 0, 1, 1], [], []>} : vector<8x128xf32>, vector<128x512xf32>, vector<8x512xf32> -> vector<8x512xf32>
    %207 = vector.broadcast %163 : vector<8x1xf32> to vector<8x512xf32>
    %208 = arith.addf %206, %207 : vector<8x512xf32>
    %c1_159 = arith.constant 1 : index
    %c0_160 = arith.constant 0 : index
    %c0_161 = arith.constant 0 : index
    %209 = vector.load %arg4[%c1_159, %c0_160, %c0_161] : memref<2x8x1xf32, #tpu.memory_space<vmem>>, vector<1x8x1xf32>
    %210 = vector.shape_cast %209 : vector<1x8x1xf32> to vector<8x1xf32>
    %c1_162 = arith.constant 1 : index
    %c0_163 = arith.constant 0 : index
    %c0_164 = arith.constant 0 : index
    %211 = vector.load %arg5[%c1_162, %c0_163, %c0_164] : memref<2x8x1xf32, #tpu.memory_space<vmem>>, vector<1x8x1xf32>
    %212 = vector.shape_cast %211 : vector<1x8x1xf32> to vector<8x1xf32>
    %cst_165 = arith.constant dense<0.000000e+00> : vector<8xf32>
    %213 = vector.multi_reduction <add>, %208, %cst_165 [1] : vector<8x512xf32> to vector<8xf32>
    %214 = vector.shape_cast %213 : vector<8xf32> to vector<8x1xf32>
    %cst_166 = arith.constant 0.001953125 : f32
    %215 = vector.broadcast %cst_166 : f32 to vector<8x1xf32>
    %216 = arith.mulf %214, %215 : vector<8x1xf32>
    %217 = arith.mulf %208, %208 : vector<8x512xf32>
    %cst_167 = arith.constant dense<0.000000e+00> : vector<8xf32>
    %218 = vector.multi_reduction <add>, %217, %cst_167 [1] : vector<8x512xf32> to vector<8xf32>
    %219 = vector.shape_cast %218 : vector<8xf32> to vector<8x1xf32>
    %cst_168 = arith.constant 0.001953125 : f32
    %220 = vector.broadcast %cst_168 : f32 to vector<8x1xf32>
    %221 = arith.mulf %219, %220 : vector<8x1xf32>
    %222 = arith.mulf %216, %216 : vector<8x1xf32>
    %223 = arith.subf %221, %222 : vector<8x1xf32>
    %cst_169 = arith.constant 0.000000e+00 : f32
    %224 = vector.broadcast %cst_169 : f32 to vector<8x1xf32>
    %225 = arith.maximumf %223, %224 : vector<8x1xf32>
    %cst_170 = arith.constant 9.99999974E-6 : f32
    %226 = vector.broadcast %cst_170 : f32 to vector<8x1xf32>
    %227 = arith.addf %225, %226 : vector<8x1xf32>
    %228 = math.rsqrt %227 : vector<8x1xf32>
    %229 = arith.mulf %210, %228 : vector<8x1xf32>
    %230 = arith.mulf %216, %229 : vector<8x1xf32>
    %231 = arith.subf %212, %230 : vector<8x1xf32>
    %232 = vector.broadcast %229 : vector<8x1xf32> to vector<8x512xf32>
    %233 = arith.mulf %208, %232 : vector<8x512xf32>
    %234 = vector.broadcast %231 : vector<8x1xf32> to vector<8x512xf32>
    %235 = arith.addf %233, %234 : vector<8x512xf32>
    %cst_171 = arith.constant 0.000000e+00 : f32
    %236 = vector.broadcast %cst_171 : f32 to vector<8x512xf32>
    %237 = arith.maximumf %235, %236 : vector<8x512xf32>
    %c1_172 = arith.constant 1 : index
    %c0_173 = arith.constant 0 : index
    %c0_174 = arith.constant 0 : index
    %238 = vector.load %arg6[%c1_172, %c0_173, %c0_174] : memref<2x8x128xf32, #tpu.memory_space<vmem>>, vector<1x8x128xf32>
    %239 = vector.shape_cast %238 : vector<1x8x128xf32> to vector<8x128xf32>
    %c1_175 = arith.constant 1 : index
    %c0_176 = arith.constant 0 : index
    %c0_177 = arith.constant 0 : index
    %240 = vector.load %arg7[%c1_175, %c0_176, %c0_177] : memref<2x8x1xf32, #tpu.memory_space<vmem>>, vector<1x8x1xf32>
    %241 = vector.shape_cast %240 : vector<1x8x1xf32> to vector<8x1xf32>
    %c17_i32_178 = arith.constant 17 : i32
    %242 = tpu.dynamic_rotate %237 by %c17_i32_178 dim 1 : vector<8x512xf32>, i32 -> vector<8x512xf32>
    %c0_179 = arith.constant 0 : index
    %c0_180 = arith.constant 0 : index
    %243 = vector.load %arg1[%c0_179, %c0_180] : memref<9x512xf32, #tpu.memory_space<vmem>>, vector<1x512xf32>
    %244 = vector.broadcast %243 : vector<1x512xf32> to vector<8x512xf32>
    %245 = arith.mulf %242, %244 : vector<8x512xf32>
    %c0_181 = arith.constant 0 : index
    %c0_182 = arith.constant 0 : index
    %246 = vector.load %arg11[%c0_181, %c0_182] : memref<128x512xf32, #tpu.memory_space<vmem>>, vector<8x512xf32>
    tpu.vector_store %arg11[%c0_181, %c0_182], %245 {strides = array<i32>} : memref<128x512xf32, #tpu.memory_space<vmem>>, vector<8x512xf32>,
    %c16_i32_183 = arith.constant 16 : i32
    %247 = tpu.dynamic_rotate %237 by %c16_i32_183 dim 1 : vector<8x512xf32>, i32 -> vector<8x512xf32>
    %c1_184 = arith.constant 1 : index
    %c0_185 = arith.constant 0 : index
    %248 = vector.load %arg1[%c1_184, %c0_185] : memref<9x512xf32, #tpu.memory_space<vmem>>, vector<1x512xf32>
    %249 = vector.broadcast %248 : vector<1x512xf32> to vector<8x512xf32>
    %250 = arith.mulf %247, %249 : vector<8x512xf32>
    %c8_186 = arith.constant 8 : index
    %c0_187 = arith.constant 0 : index
    %251 = vector.load %arg11[%c8_186, %c0_187] : memref<128x512xf32, #tpu.memory_space<vmem>>, vector<8x512xf32>
    tpu.vector_store %arg11[%c8_186, %c0_187], %250 {strides = array<i32>} : memref<128x512xf32, #tpu.memory_space<vmem>>, vector<8x512xf32>,
    %c15_i32_188 = arith.constant 15 : i32
    %252 = tpu.dynamic_rotate %237 by %c15_i32_188 dim 1 : vector<8x512xf32>, i32 -> vector<8x512xf32>
    %c2_189 = arith.constant 2 : index
    %c0_190 = arith.constant 0 : index
    %253 = vector.load %arg1[%c2_189, %c0_190] : memref<9x512xf32, #tpu.memory_space<vmem>>, vector<1x512xf32>
    %254 = vector.broadcast %253 : vector<1x512xf32> to vector<8x512xf32>
    %255 = arith.mulf %252, %254 : vector<8x512xf32>
    %c16_191 = arith.constant 16 : index
    %c0_192 = arith.constant 0 : index
    %256 = vector.load %arg11[%c16_191, %c0_192] : memref<128x512xf32, #tpu.memory_space<vmem>>, vector<8x512xf32>
    tpu.vector_store %arg11[%c16_191, %c0_192], %255 {strides = array<i32>} : memref<128x512xf32, #tpu.memory_space<vmem>>, vector<8x512xf32>,
    %c1_i32_193 = arith.constant 1 : i32
    %257 = tpu.dynamic_rotate %237 by %c1_i32_193 dim 1 : vector<8x512xf32>, i32 -> vector<8x512xf32>
    %c3_194 = arith.constant 3 : index
    %c0_195 = arith.constant 0 : index
    %258 = vector.load %arg1[%c3_194, %c0_195] : memref<9x512xf32, #tpu.memory_space<vmem>>, vector<1x512xf32>
    %259 = vector.broadcast %258 : vector<1x512xf32> to vector<8x512xf32>
    %260 = arith.mulf %257, %259 : vector<8x512xf32>
    %c24_196 = arith.constant 24 : index
    %c0_197 = arith.constant 0 : index
    %261 = vector.load %arg11[%c24_196, %c0_197] : memref<128x512xf32, #tpu.memory_space<vmem>>, vector<8x512xf32>
    tpu.vector_store %arg11[%c24_196, %c0_197], %260 {strides = array<i32>} : memref<128x512xf32, #tpu.memory_space<vmem>>, vector<8x512xf32>,
    %c32_198 = arith.constant 32 : index
    %c0_199 = arith.constant 0 : index
    %262 = vector.load %arg11[%c32_198, %c0_199] : memref<128x512xf32, #tpu.memory_space<vmem>>, vector<8x512xf32>
    tpu.vector_store %arg11[%c32_198, %c0_199], %237 {strides = array<i32>} : memref<128x512xf32, #tpu.memory_space<vmem>>, vector<8x512xf32>,
    %c511_i32_200 = arith.constant 511 : i32
    %263 = tpu.dynamic_rotate %237 by %c511_i32_200 dim 1 : vector<8x512xf32>, i32 -> vector<8x512xf32>
    %c5_201 = arith.constant 5 : index
    %c0_202 = arith.constant 0 : index
    %264 = vector.load %arg1[%c5_201, %c0_202] : memref<9x512xf32, #tpu.memory_space<vmem>>, vector<1x512xf32>
    %265 = vector.broadcast %264 : vector<1x512xf32> to vector<8x512xf32>
    %266 = arith.mulf %263, %265 : vector<8x512xf32>
    %c40_203 = arith.constant 40 : index
    %c0_204 = arith.constant 0 : index
    %267 = vector.load %arg11[%c40_203, %c0_204] : memref<128x512xf32, #tpu.memory_space<vmem>>, vector<8x512xf32>
    tpu.vector_store %arg11[%c40_203, %c0_204], %266 {strides = array<i32>} : memref<128x512xf32, #tpu.memory_space<vmem>>, vector<8x512xf32>,
    %c497_i32_205 = arith.constant 497 : i32
    %268 = tpu.dynamic_rotate %237 by %c497_i32_205 dim 1 : vector<8x512xf32>, i32 -> vector<8x512xf32>
    %c6_206 = arith.constant 6 : index
    %c0_207 = arith.constant 0 : index
    %269 = vector.load %arg1[%c6_206, %c0_207] : memref<9x512xf32, #tpu.memory_space<vmem>>, vector<1x512xf32>
    %270 = vector.broadcast %269 : vector<1x512xf32> to vector<8x512xf32>
    %271 = arith.mulf %268, %270 : vector<8x512xf32>
    %c48_208 = arith.constant 48 : index
    %c0_209 = arith.constant 0 : index
    %272 = vector.load %arg11[%c48_208, %c0_209] : memref<128x512xf32, #tpu.memory_space<vmem>>, vector<8x512xf32>
    tpu.vector_store %arg11[%c48_208, %c0_209], %271 {strides = array<i32>} : memref<128x512xf32, #tpu.memory_space<vmem>>, vector<8x512xf32>,
    %c496_i32_210 = arith.constant 496 : i32
    %273 = tpu.dynamic_rotate %237 by %c496_i32_210 dim 1 : vector<8x512xf32>, i32 -> vector<8x512xf32>
    %c7_211 = arith.constant 7 : index
    %c0_212 = arith.constant 0 : index
    %274 = vector.load %arg1[%c7_211, %c0_212] : memref<9x512xf32, #tpu.memory_space<vmem>>, vector<1x512xf32>
    %275 = vector.broadcast %274 : vector<1x512xf32> to vector<8x512xf32>
    %276 = arith.mulf %273, %275 : vector<8x512xf32>
    %c56_213 = arith.constant 56 : index
    %c0_214 = arith.constant 0 : index
    %277 = vector.load %arg11[%c56_213, %c0_214] : memref<128x512xf32, #tpu.memory_space<vmem>>, vector<8x512xf32>
    tpu.vector_store %arg11[%c56_213, %c0_214], %276 {strides = array<i32>} : memref<128x512xf32, #tpu.memory_space<vmem>>, vector<8x512xf32>,
    %c495_i32_215 = arith.constant 495 : i32
    %278 = tpu.dynamic_rotate %237 by %c495_i32_215 dim 1 : vector<8x512xf32>, i32 -> vector<8x512xf32>
    %c8_216 = arith.constant 8 : index
    %c0_217 = arith.constant 0 : index
    %279 = vector.load %arg1[%c8_216, %c0_217] : memref<9x512xf32, #tpu.memory_space<vmem>>, vector<1x512xf32>
    %280 = vector.broadcast %279 : vector<1x512xf32> to vector<8x512xf32>
    %281 = arith.mulf %278, %280 : vector<8x512xf32>
    %c64_218 = arith.constant 64 : index
    %c0_219 = arith.constant 0 : index
    %282 = vector.load %arg11[%c64_218, %c0_219] : memref<128x512xf32, #tpu.memory_space<vmem>>, vector<8x512xf32>
    tpu.vector_store %arg11[%c64_218, %c0_219], %281 {strides = array<i32>} : memref<128x512xf32, #tpu.memory_space<vmem>>, vector<8x512xf32>,
    %c0_220 = arith.constant 0 : index
    %c0_221 = arith.constant 0 : index
    %283 = vector.load %arg11[%c0_220, %c0_221] : memref<128x512xf32, #tpu.memory_space<vmem>>, vector<128x512xf32>
    %cst_222 = arith.constant dense<0.000000e+00> : vector<8x512xf32>
    %284 = tpu.matmul %239, %283, %cst_222 {dimension_numbers = #tpu.dot_dimension_numbers<[1], [0], [0], [1], [0, 0, 1, 1], [], []>} : vector<8x128xf32>, vector<128x512xf32>, vector<8x512xf32> -> vector<8x512xf32>
    %285 = vector.broadcast %241 : vector<8x1xf32> to vector<8x512xf32>
    %286 = arith.addf %284, %285 : vector<8x512xf32>
    %c1_223 = arith.constant 1 : index
    %c0_224 = arith.constant 0 : index
    %c0_225 = arith.constant 0 : index
    %287 = vector.load %arg8[%c1_223, %c0_224, %c0_225] : memref<2x8x1xf32, #tpu.memory_space<vmem>>, vector<1x8x1xf32>
    %288 = vector.shape_cast %287 : vector<1x8x1xf32> to vector<8x1xf32>
    %c1_226 = arith.constant 1 : index
    %c0_227 = arith.constant 0 : index
    %c0_228 = arith.constant 0 : index
    %289 = vector.load %arg9[%c1_226, %c0_227, %c0_228] : memref<2x8x1xf32, #tpu.memory_space<vmem>>, vector<1x8x1xf32>
    %290 = vector.shape_cast %289 : vector<1x8x1xf32> to vector<8x1xf32>
    %cst_229 = arith.constant dense<0.000000e+00> : vector<8xf32>
    %291 = vector.multi_reduction <add>, %286, %cst_229 [1] : vector<8x512xf32> to vector<8xf32>
    %292 = vector.shape_cast %291 : vector<8xf32> to vector<8x1xf32>
    %cst_230 = arith.constant 0.001953125 : f32
    %293 = vector.broadcast %cst_230 : f32 to vector<8x1xf32>
    %294 = arith.mulf %292, %293 : vector<8x1xf32>
    %295 = arith.mulf %286, %286 : vector<8x512xf32>
    %cst_231 = arith.constant dense<0.000000e+00> : vector<8xf32>
    %296 = vector.multi_reduction <add>, %295, %cst_231 [1] : vector<8x512xf32> to vector<8xf32>
    %297 = vector.shape_cast %296 : vector<8xf32> to vector<8x1xf32>
    %cst_232 = arith.constant 0.001953125 : f32
    %298 = vector.broadcast %cst_232 : f32 to vector<8x1xf32>
    %299 = arith.mulf %297, %298 : vector<8x1xf32>
    %300 = arith.mulf %294, %294 : vector<8x1xf32>
    %301 = arith.subf %299, %300 : vector<8x1xf32>
    %cst_233 = arith.constant 0.000000e+00 : f32
    %302 = vector.broadcast %cst_233 : f32 to vector<8x1xf32>
    %303 = arith.maximumf %301, %302 : vector<8x1xf32>
    %cst_234 = arith.constant 9.99999974E-6 : f32
    %304 = vector.broadcast %cst_234 : f32 to vector<8x1xf32>
    %305 = arith.addf %303, %304 : vector<8x1xf32>
    %306 = math.rsqrt %305 : vector<8x1xf32>
    %307 = arith.mulf %288, %306 : vector<8x1xf32>
    %308 = arith.mulf %294, %307 : vector<8x1xf32>
    %309 = arith.subf %290, %308 : vector<8x1xf32>
    %310 = vector.broadcast %307 : vector<8x1xf32> to vector<8x512xf32>
    %311 = arith.mulf %286, %310 : vector<8x512xf32>
    %312 = vector.broadcast %309 : vector<8x1xf32> to vector<8x512xf32>
    %313 = arith.addf %311, %312 : vector<8x512xf32>
    %314 = arith.addf %159, %313 : vector<8x512xf32>
    %cst_235 = arith.constant 0.000000e+00 : f32
    %315 = vector.broadcast %cst_235 : f32 to vector<8x512xf32>
    %316 = arith.maximumf %314, %315 : vector<8x512xf32>
    %c0_236 = arith.constant 0 : index
    %c0_237 = arith.constant 0 : index
    %317 = vector.load %arg10[%c0_236, %c0_237] : memref<8x512xf32, #tpu.memory_space<vmem>>, vector<8x512xf32>
    tpu.vector_store %arg10[%c0_236, %c0_237], %316 {strides = array<i32>} : memref<8x512xf32, #tpu.memory_space<vmem>>, vector<8x512xf32>,
    return
  }
}

</mosaic_0001>

<llo_original>
// kernel: xnet_forward.1
$region0: #{xnet_forward.1}
  #allocation0 [shape = 'u32[]', space=smem, size = 0x4, offset = 0x4, fixed_abs, tag = 'smem constant byte address 0x4 - core index']
  #allocation1 [shape = 'u32[72,128]{1,0:T(1,128)}', space=vmem, size = 0x9000, scoped, tag = 'internal scratch']
  #allocation2 [shape = 'f32[128,512]{1,0:T(8,128)}', space=vmem, size = 0x40000, scoped, tag = 'scratch operand']
  %s0 = inlined_call_operand.vmem [shape: f32[8,512], index: 0, kind: input, shape index: {}, may-alias: {0,10}]
  %s1 = inlined_call_operand.vmem [shape: f32[9,512], index: 1, kind: input, shape index: {}]
  %s2 = inlined_call_operand.vmem [shape: f32[2,8,128], index: 2, kind: input, shape index: {}]
  %s3 = inlined_call_operand.vmem [shape: f32[2,8,1], index: 3, kind: input, shape index: {}]
  %s4 = inlined_call_operand.vmem [shape: f32[2,8,1], index: 4, kind: input, shape index: {}]
  %s5 = inlined_call_operand.vmem [shape: f32[2,8,1], index: 5, kind: input, shape index: {}]
  %s6 = inlined_call_operand.vmem [shape: f32[2,8,128], index: 6, kind: input, shape index: {}]
  %s7 = inlined_call_operand.vmem [shape: f32[2,8,1], index: 7, kind: input, shape index: {}]
  %s8 = inlined_call_operand.vmem [shape: f32[2,8,1], index: 8, kind: input, shape index: {}]
  %s9 = inlined_call_operand.vmem [shape: f32[2,8,1], index: 9, kind: input, shape index: {}]
  %s10 = inlined_call_operand.vmem [shape: f32[8,512], index: 10, kind: output, shape index: {}, may-alias: {0,10}]
  %s11 = sld [smem:[#allocation0]]
  $region50: #{xnet_forward.1} parent=0
    _
  %s13 = ssub.s32 1, %s11
  %s14 = scalar_select 0, %s13, %s11
  // Predicated region
  $region2: #{xnet_forward.1} parent=0 // pred_check
    _
  $region3: #{xnet_forward.1} parent=0 // pred_check_branch
    %16 = sbr.rel (0) target = $region5
  $region4: #{xnet_forward.1} parent=0 // pred_region
    _
  $region5: #{xnet_forward.1} parent=0 // pred_fallthru
    _
  // Predicated region
  $region6: #{xnet_forward.1} parent=0 // pred_check
    _
  $region7: #{xnet_forward.1} parent=0 // pred_check_branch
    %18 = sbr.rel (0) target = $region9
  $region8: #{xnet_forward.1} parent=0 // pred_region
    _
  $region9: #{xnet_forward.1} parent=0 // pred_fallthru
    _
  // Predicated region
  $region10: #{xnet_forward.1} parent=0 // pred_check
    _
  $region11: #{xnet_forward.1} parent=0 // pred_check_branch
    %20 = sbr.rel (0) target = $region13
  $region12: #{xnet_forward.1} parent=0 // pred_region
    _
  $region13: #{xnet_forward.1} parent=0 // pred_fallthru
    _
  // Predicated region
  $region14: #{xnet_forward.1} parent=0 // pred_check
    _
  $region15: #{xnet_forward.1} parent=0 // pred_check_branch
    %22 = sbr.rel (0) target = $region17
  $region16: #{xnet_forward.1} parent=0 // pred_region
    _
  $region17: #{xnet_forward.1} parent=0 // pred_fallthru
    _
  // Predicated region
  $region18: #{xnet_forward.1} parent=0 // pred_check
    _
  $region19: #{xnet_forward.1} parent=0 // pred_check_branch
    %24 = sbr.rel (0) target = $region21
  $region20: #{xnet_forward.1} parent=0 // pred_region
    _
  $region21: #{xnet_forward.1} parent=0 // pred_fallthru
    _
  // Predicated region
  $region22: #{xnet_forward.1} parent=0 // pred_check
    _
  $region23: #{xnet_forward.1} parent=0 // pred_check_branch
    %26 = sbr.rel (0) target = $region25
  $region24: #{xnet_forward.1} parent=0 // pred_region
    _
  $region25: #{xnet_forward.1} parent=0 // pred_fallthru
    _
  // Predicated region
  $region26: #{xnet_forward.1} parent=0 // pred_check
    _
  $region27: #{xnet_forward.1} parent=0 // pred_check_branch
    %28 = sbr.rel (0) target = $region29
  $region28: #{xnet_forward.1} parent=0 // pred_region
    _
  $region29: #{xnet_forward.1} parent=0 // pred_fallthru
    _
  // Predicated region
  $region30: #{xnet_forward.1} parent=0 // pred_check
    _
  $region31: #{xnet_forward.1} parent=0 // pred_check_branch
    %30 = sbr.rel (0) target = $region33
  $region32: #{xnet_forward.1} parent=0 // pred_region
    _
  $region33: #{xnet_forward.1} parent=0 // pred_fallthru
    _
  // Predicated region
  $region34: #{xnet_forward.1} parent=0 // pred_check
    _
  $region35: #{xnet_forward.1} parent=0 // pred_check_branch
    %32 = sbr.rel (0) target = $region37
  $region36: #{xnet_forward.1} parent=0 // pred_region
    _
  $region37: #{xnet_forward.1} parent=0 // pred_fallthru
    _
  // Predicated region
  $region38: #{xnet_forward.1} parent=0 // pred_check
    _
  $region39: #{xnet_forward.1} parent=0 // pred_check_branch
    %34 = sbr.rel (0) target = $region41
  $region40: #{xnet_forward.1} parent=0 // pred_region
    _
  $region41: #{xnet_forward.1} parent=0 // pred_fallthru
    _
  %35 = vst [vmem:[#allocation2 + $0x120] sm:$0xff] 0.0
  %36 = vst [vmem:[#allocation2 + $0x128] sm:$0xff] 0.0
  %37 = vst [vmem:[#allocation2 + $0x130] sm:$0xff] 0.0
  %38 = vst [vmem:[#allocation2 + $0x138] sm:$0xff] 0.0
  %39 = vst [vmem:[#allocation2 + $0x140] sm:$0xff] 0.0
  %40 = vst [vmem:[#allocation2 + $0x148] sm:$0xff] 0.0
  %41 = vst [vmem:[#allocation2 + $0x150] sm:$0xff] 0.0
  %42 = vst [vmem:[#allocation2 + $0x158] sm:$0xff] 0.0
  %43 = vst [vmem:[#allocation2 + $0x160] sm:$0xff] 0.0
  %44 = vst [vmem:[#allocation2 + $0x168] sm:$0xff] 0.0
  %45 = vst [vmem:[#allocation2 + $0x170] sm:$0xff] 0.0
  %46 = vst [vmem:[#allocation2 + $0x178] sm:$0xff] 0.0
  %47 = vst [vmem:[#allocation2 + $0x180] sm:$0xff] 0.0
  %48 = vst [vmem:[#allocation2 + $0x188] sm:$0xff] 0.0
  %49 = vst [vmem:[#allocation2 + $0x190] sm:$0xff] 0.0
  %50 = vst [vmem:[#allocation2 + $0x198] sm:$0xff] 0.0
  %51 = vst [vmem:[#allocation2 + $0x1a0] sm:$0xff] 0.0
  %52 = vst [vmem:[#allocation2 + $0x1a8] sm:$0xff] 0.0
  %53 = vst [vmem:[#allocation2 + $0x1b0] sm:$0xff] 0.0
  %54 = vst [vmem:[#allocation2 + $0x1b8] sm:$0xff] 0.0
  %55 = vst [vmem:[#allocation2 + $0x1c0] sm:$0xff] 0.0
  %56 = vst [vmem:[#allocation2 + $0x1c8] sm:$0xff] 0.0
  %57 = vst [vmem:[#allocation2 + $0x1d0] sm:$0xff] 0.0
  %58 = vst [vmem:[#allocation2 + $0x1d8] sm:$0xff] 0.0
  %59 = vst [vmem:[#allocation2 + $0x1e0] sm:$0xff] 0.0
  %60 = vst [vmem:[#allocation2 + $0x1e8] sm:$0xff] 0.0
  %61 = vst [vmem:[#allocation2 + $0x1f0] sm:$0xff] 0.0
  %62 = vst [vmem:[#allocation2 + $0x1f8] sm:$0xff] 0.0
  %v63 = vld [vmem:[%s0] sm:$0xff]
  %v64 = vld [vmem:[%s0 + $0x8] sm:$0xff]
  %v65 = vld [vmem:[%s0 + $0x10] sm:$0xff]
  %v66 = vld [vmem:[%s0 + $0x18] sm:$0xff]
  %v67 = vld [vmem:[%s2] sm:$0xff]
  %v68 = vld [vmem:[%s3] sm:$0xff]
  %69 = vrot.lane.b32.xlu0 %v63, 17
  %v70 = vpop.permute.xlu0 %69
  %71 = vrot.lane.b32.xlu0 %v64, 17
  %v72 = vpop.permute.xlu0 %71
  %73 = vrot.lane.b32.xlu0 %v65, 17
  %v74 = vpop.permute.xlu0 %73
  %75 = vrot.lane.b32.xlu0 %v66, 17
  %v76 = vpop.permute.xlu0 %75
  %v77 = vlaneseq
  %v78 = vand.u32 %v77, 127
  %vm79 = vcmp.lt.s32.totalorder %v78, 17
  %v80 = vsel %vm79, %v74, %v76
  %v81 = vsel %vm79, %v72, %v74
  %v82 = vsel %vm79, %v70, %v72
  %v83 = vsel %vm79, %v76, %v70
  %v84 = vld [vmem:[%s1] ss:$8 sm:$0xf]
  %v86 = vperm.slane %v84, 0
  %v87 = vperm.slane %v84, 1
  %v88 = vperm.slane %v84, 2
  %v89 = vperm.slane %v84, 3
  %v94 = vmul.f32 %v83, %v86
  %v95 = vmul.f32 %v82, %v87
  %v96 = vmul.f32 %v81, %v88
  %v97 = vmul.f32 %v80, %v89
  %98 = vst [vmem:[#allocation2] sm:$0xff] %v94
  %99 = vst [vmem:[#allocation2 + $0x8] sm:$0xff] %v95
  %100 = vst [vmem:[#allocation2 + $0x10] sm:$0xff] %v96
  %101 = vst [vmem:[#allocation2 + $0x18] sm:$0xff] %v97
  %102 = vrot.lane.b32.xlu0 %v63, 16
  %v103 = vpop.permute.xlu0 %102
  %104 = vrot.lane.b32.xlu0 %v64, 16
  %v105 = vpop.permute.xlu0 %104
  %106 = vrot.lane.b32.xlu0 %v65, 16
  %v107 = vpop.permute.xlu0 %106
  %108 = vrot.lane.b32.xlu0 %v66, 16
  %v109 = vpop.permute.xlu0 %108
  %vm110 = vcmp.lt.s32.totalorder %v78, 16
  %v111 = vsel %vm110, %v107, %v109
  %v112 = vsel %vm110, %v105, %v107
  %v113 = vsel %vm110, %v103, %v105
  %v114 = vsel %vm110, %v109, %v103
  %s115 = scalar_lea.vmem %s1, 1
  %v116 = vld [vmem:[%s115] ss:$8 sm:$0xf]
  %v118 = vperm.slane %v116, 0
  %v119 = vperm.slane %v116, 1
  %v120 = vperm.slane %v116, 2
  %v121 = vperm.slane %v116, 3
  %v126 = vmul.f32 %v114, %v118
  %v127 = vmul.f32 %v113, %v119
  %v128 = vmul.f32 %v112, %v120
  %v129 = vmul.f32 %v111, %v121
  %130 = vst [vmem:[#allocation2 + $0x20] sm:$0xff] %v126
  %131 = vst [vmem:[#allocation2 + $0x28] sm:$0xff] %v127
  %132 = vst [vmem:[#allocation2 + $0x30] sm:$0xff] %v128
  %133 = vst [vmem:[#allocation2 + $0x38] sm:$0xff] %v129
  %134 = vrot.lane.b32.xlu0 %v63, 15
  %v135 = vpop.permute.xlu0 %134
  %136 = vrot.lane.b32.xlu0 %v64, 15
  %v137 = vpop.permute.xlu0 %136
  %138 = vrot.lane.b32.xlu0 %v65, 15
  %v139 = vpop.permute.xlu0 %138
  %140 = vrot.lane.b32.xlu0 %v66, 15
  %v141 = vpop.permute.xlu0 %140
  %vm142 = vcmp.lt.s32.totalorder %v78, 15
  %v143 = vsel %vm142, %v139, %v141
  %v144 = vsel %vm142, %v137, %v139
  %v145 = vsel %vm142, %v135, %v137
  %v146 = vsel %vm142, %v141, %v135
  %s147 = scalar_lea.vmem %s1, 2
  %v148 = vld [vmem:[%s147] ss:$8 sm:$0xf]
  %v150 = vperm.slane %v148, 0
  %v151 = vperm.slane %v148, 1
  %v152 = vperm.slane %v148, 2
  %v153 = vperm.slane %v148, 3
  %v158 = vmul.f32 %v146, %v150
  %v159 = vmul.f32 %v145, %v151
  %v160 = vmul.f32 %v144, %v152
  %v161 = vmul.f32 %v143, %v153
  %162 = vst [vmem:[#allocation2 + $0x40] sm:$0xff] %v158
  %163 = vst [vmem:[#allocation2 + $0x48] sm:$0xff] %v159
  %164 = vst [vmem:[#allocation2 + $0x50] sm:$0xff] %v160
  %165 = vst [vmem:[#allocation2 + $0x58] sm:$0xff] %v161
  %166 = vrot.lane.b32.xlu0 %v63, 1
  %v167 = vpop.permute.xlu0 %166
  %168 = vrot.lane.b32.xlu0 %v64, 1
  %v169 = vpop.permute.xlu0 %168
  %170 = vrot.lane.b32.xlu0 %v65, 1
  %v171 = vpop.permute.xlu0 %170
  %172 = vrot.lane.b32.xlu0 %v66, 1
  %v173 = vpop.permute.xlu0 %172
  %vm174 = vcmp.lt.s32.totalorder %v78, 1
  %v175 = vsel %vm174, %v171, %v173
  %v176 = vsel %vm174, %v169, %v171
  %v177 = vsel %vm174, %v167, %v169
  %v178 = vsel %vm174, %v173, %v167
  %s179 = scalar_lea.vmem %s1, 3
  %v180 = vld [vmem:[%s179] ss:$8 sm:$0xf]
  %v182 = vperm.slane %v180, 0
  %v183 = vperm.slane %v180, 1
  %v184 = vperm.slane %v180, 2
  %v185 = vperm.slane %v180, 3
  %v190 = vmul.f32 %v178, %v182
  %v191 = vmul.f32 %v177, %v183
  %v192 = vmul.f32 %v176, %v184
  %v193 = vmul.f32 %v175, %v185
  %194 = vst [vmem:[#allocation2 + $0x60] sm:$0xff] %v190
  %195 = vst [vmem:[#allocation2 + $0x68] sm:$0xff] %v191
  %196 = vst [vmem:[#allocation2 + $0x70] sm:$0xff] %v192
  %197 = vst [vmem:[#allocation2 + $0x78] sm:$0xff] %v193
  %198 = vst [vmem:[#allocation2 + $0x80] sm:$0xff] %v63
  %199 = vst [vmem:[#allocation2 + $0x88] sm:$0xff] %v64
  %200 = vst [vmem:[#allocation2 + $0x90] sm:$0xff] %v65
  %201 = vst [vmem:[#allocation2 + $0x98] sm:$0xff] %v66
  %202 = vrot.lane.b32.xlu0 %v63, 127
  %v203 = vpop.permute.xlu0 %202
  %204 = vrot.lane.b32.xlu0 %v64, 127
  %v205 = vpop.permute.xlu0 %204
  %206 = vrot.lane.b32.xlu0 %v65, 127
  %v207 = vpop.permute.xlu0 %206
  %208 = vrot.lane.b32.xlu0 %v66, 127
  %v209 = vpop.permute.xlu0 %208
  %vm210 = vcmp.lt.s32.totalorder %v78, 127
  %v211 = vsel %vm210, %v207, %v209
  %v212 = vsel %vm210, %v205, %v207
  %v213 = vsel %vm210, %v203, %v205
  %v214 = vsel %vm210, %v209, %v203
  %s215 = scalar_lea.vmem %s1, 5
  %v216 = vld [vmem:[%s215] ss:$8 sm:$0xf]
  %v218 = vperm.slane %v216, 0
  %v219 = vperm.slane %v216, 1
  %v220 = vperm.slane %v216, 2
  %v221 = vperm.slane %v216, 3
  %v226 = vmul.f32 %v213, %v218
  %v227 = vmul.f32 %v212, %v219
  %v228 = vmul.f32 %v211, %v220
  %v229 = vmul.f32 %v214, %v221
  %230 = vst [vmem:[#allocation2 + $0xa0] sm:$0xff] %v226
  %231 = vst [vmem:[#allocation2 + $0xa8] sm:$0xff] %v227
  %232 = vst [vmem:[#allocation2 + $0xb0] sm:$0xff] %v228
  %233 = vst [vmem:[#allocation2 + $0xb8] sm:$0xff] %v229
  %234 = vrot.lane.b32.xlu0 %v63, 113
  %v235 = vpop.permute.xlu0 %234
  %236 = vrot.lane.b32.xlu0 %v64, 113
  %v237 = vpop.permute.xlu0 %236
  %238 = vrot.lane.b32.xlu0 %v65, 113
  %v239 = vpop.permute.xlu0 %238
  %240 = vrot.lane.b32.xlu0 %v66, 113
  %v241 = vpop.permute.xlu0 %240
  %vm242 = vcmp.lt.s32.totalorder %v78, 113
  %v243 = vsel %vm242, %v239, %v241
  %v244 = vsel %vm242, %v237, %v239
  %v245 = vsel %vm242, %v235, %v237
  %v246 = vsel %vm242, %v241, %v235
  %s247 = scalar_lea.vmem %s1, 6
  %v248 = vld [vmem:[%s247] ss:$8 sm:$0xf]
  %v250 = vperm.slane %v248, 0
  %v251 = vperm.slane %v248, 1
  %v252 = vperm.slane %v248, 2
  %v253 = vperm.slane %v248, 3
  %v258 = vmul.f32 %v245, %v250
  %v259 = vmul.f32 %v244, %v251
  %v260 = vmul.f32 %v243, %v252
  %v261 = vmul.f32 %v246, %v253
  %262 = vst [vmem:[#allocation2 + $0xc0] sm:$0xff] %v258
  %263 = vst [vmem:[#allocation2 + $0xc8] sm:$0xff] %v259
  %264 = vst [vmem:[#allocation2 + $0xd0] sm:$0xff] %v260
  %265 = vst [vmem:[#allocation2 + $0xd8] sm:$0xff] %v261
  %266 = vrot.lane.b32.xlu0 %v63, 112
  %v267 = vpop.permute.xlu0 %266
  %268 = vrot.lane.b32.xlu0 %v64, 112
  %v269 = vpop.permute.xlu0 %268
  %270 = vrot.lane.b32.xlu0 %v65, 112
  %v271 = vpop.permute.xlu0 %270
  %272 = vrot.lane.b32.xlu0 %v66, 112
  %v273 = vpop.permute.xlu0 %272
  %vm274 = vcmp.lt.s32.totalorder %v78, 112
  %v275 = vsel %vm274, %v271, %v273
  %v276 = vsel %vm274, %v269, %v271
  %v277 = vsel %vm274, %v267, %v269
  %v278 = vsel %vm274, %v273, %v267
  %s279 = scalar_lea.vmem %s1, 7
  %v280 = vld [vmem:[%s279] ss:$8 sm:$0xf]
  %v282 = vperm.slane %v280, 0
  %v283 = vperm.slane %v280, 1
  %v284 = vperm.slane %v280, 2
  %v285 = vperm.slane %v280, 3
  %v290 = vmul.f32 %v277, %v282
  %v291 = vmul.f32 %v276, %v283
  %v292 = vmul.f32 %v275, %v284
  %v293 = vmul.f32 %v278, %v285
  %294 = vst [vmem:[#allocation2 + $0xe0] sm:$0xff] %v290
  %295 = vst [vmem:[#allocation2 + $0xe8] sm:$0xff] %v291
  %296 = vst [vmem:[#allocation2 + $0xf0] sm:$0xff] %v292
  %297 = vst [vmem:[#allocation2 + $0xf8] sm:$0xff] %v293
  %298 = vrot.lane.b32.xlu0 %v63, 111
  %v299 = vpop.permute.xlu0 %298
  %300 = vrot.lane.b32.xlu0 %v64, 111
  %v301 = vpop.permute.xlu0 %300
  %302 = vrot.lane.b32.xlu0 %v65, 111
  %v303 = vpop.permute.xlu0 %302
  %304 = vrot.lane.b32.xlu0 %v66, 111
  %v305 = vpop.permute.xlu0 %304
  %vm306 = vcmp.lt.s32.totalorder %v78, 111
  %v307 = vsel %vm306, %v303, %v305
  %v308 = vsel %vm306, %v301, %v303
  %v309 = vsel %vm306, %v299, %v301
  %v310 = vsel %vm306, %v305, %v299
  %s311 = scalar_lea.vmem %s1, 32
  %v312 = vld [vmem:[%s311] ss:$8 sm:$0xf]
  %v314 = vperm.slane %v312, 0
  %v315 = vperm.slane %v312, 1
  %v316 = vperm.slane %v312, 2
  %v317 = vperm.slane %v312, 3
  %v322 = vmul.f32 %v309, %v314
  %v323 = vmul.f32 %v308, %v315
  %v324 = vmul.f32 %v307, %v316
  %v325 = vmul.f32 %v310, %v317
  %326 = vst [vmem:[#allocation2 + $0x100] sm:$0xff] %v322
  %327 = vst [vmem:[#allocation2 + $0x108] sm:$0xff] %v323
  %328 = vst [vmem:[#allocation2 + $0x110] sm:$0xff] %v324
  %329 = vst [vmem:[#allocation2 + $0x118] sm:$0xff] %v325
  %v330 = vld [vmem:[#allocation2] sm:$0xff]
  %v331 = vld [vmem:[#allocation2 + $0x8] sm:$0xff]
  %v332 = vld [vmem:[#allocation2 + $0x10] sm:$0xff]
  %v333 = vld [vmem:[#allocation2 + $0x18] sm:$0xff]
  %v334 = vld [vmem:[#allocation2 + $0x20] sm:$0xff]
  %v335 = vld [vmem:[#allocation2 + $0x28] sm:$0xff]
  %v336 = vld [vmem:[#allocation2 + $0x30] sm:$0xff]
  %v337 = vld [vmem:[#allocation2 + $0x38] sm:$0xff]
  %v338 = vld [vmem:[#allocation2 + $0x40] sm:$0xff]
  %v339 = vld [vmem:[#allocation2 + $0x48] sm:$0xff]
  %v340 = vld [vmem:[#allocation2 + $0x50] sm:$0xff]
  %v341 = vld [vmem:[#allocation2 + $0x58] sm:$0xff]
  %v342 = vld [vmem:[#allocation2 + $0x60] sm:$0xff]
  %v343 = vld [vmem:[#allocation2 + $0x68] sm:$0xff]
  %v344 = vld [vmem:[#allocation2 + $0x70] sm:$0xff]
  %v345 = vld [vmem:[#allocation2 + $0x78] sm:$0xff]
  %v346 = vld [vmem:[#allocation2 + $0x80] sm:$0xff]
  %v347 = vld [vmem:[#allocation2 + $0x88] sm:$0xff]
  %v348 = vld [vmem:[#allocation2 + $0x90] sm:$0xff]
  %v349 = vld [vmem:[#allocation2 + $0x98] sm:$0xff]
  %v350 = vld [vmem:[#allocation2 + $0xa0] sm:$0xff]
  %v351 = vld [vmem:[#allocation2 + $0xa8] sm:$0xff]
  %v352 = vld [vmem:[#allocation2 + $0xb0] sm:$0xff]
  %v353 = vld [vmem:[#allocation2 + $0xb8] sm:$0xff]
  %v354 = vld [vmem:[#allocation2 + $0xc0] sm:$0xff]
  %v355 = vld [vmem:[#allocation2 + $0xc8] sm:$0xff]
  %v356 = vld [vmem:[#allocation2 + $0xd0] sm:$0xff]
  %v357 = vld [vmem:[#allocation2 + $0xd8] sm:$0xff]
  %v358 = vld [vmem:[#allocation2 + $0xe0] sm:$0xff]
  %v359 = vld [vmem:[#allocation2 + $0xe8] sm:$0xff]
  %v360 = vld [vmem:[#allocation2 + $0xf0] sm:$0xff]
  %v361 = vld [vmem:[#allocation2 + $0xf8] sm:$0xff]
  %v362 = vld [vmem:[#allocation2 + $0x100] sm:$0xff]
  %v363 = vld [vmem:[#allocation2 + $0x108] sm:$0xff]
  %v364 = vld [vmem:[#allocation2 + $0x110] sm:$0xff]
  %v365 = vld [vmem:[#allocation2 + $0x118] sm:$0xff]
  %v366 = vld [vmem:[#allocation2 + $0x120] sm:$0xff]
  %v367 = vld [vmem:[#allocation2 + $0x128] sm:$0xff]
  %v368 = vld [vmem:[#allocation2 + $0x130] sm:$0xff]
  %v369 = vld [vmem:[#allocation2 + $0x138] sm:$0xff]
  %v370 = vld [vmem:[#allocation2 + $0x140] sm:$0xff]
  %v371 = vld [vmem:[#allocation2 + $0x148] sm:$0xff]
  %v372 = vld [vmem:[#allocation2 + $0x150] sm:$0xff]
  %v373 = vld [vmem:[#allocation2 + $0x158] sm:$0xff]
  %v374 = vld [vmem:[#allocation2 + $0x160] sm:$0xff]
  %v375 = vld [vmem:[#allocation2 + $0x168] sm:$0xff]
  %v376 = vld [vmem:[#allocation2 + $0x170] sm:$0xff]
  %v377 = vld [vmem:[#allocation2 + $0x178] sm:$0xff]
  %v378 = vld [vmem:[#allocation2 + $0x180] sm:$0xff]
  %v379 = vld [vmem:[#allocation2 + $0x188] sm:$0xff]
  %v380 = vld [vmem:[#allocation2 + $0x190] sm:$0xff]
  %v381 = vld [vmem:[#allocation2 + $0x198] sm:$0xff]
  %v382 = vld [vmem:[#allocation2 + $0x1a0] sm:$0xff]
  %v383 = vld [vmem:[#allocation2 + $0x1a8] sm:$0xff]
  %v384 = vld [vmem:[#allocation2 + $0x1b0] sm:$0xff]
  %v385 = vld [vmem:[#allocation2 + $0x1b8] sm:$0xff]
  %v386 = vld [vmem:[#allocation2 + $0x1c0] sm:$0xff]
  %v387 = vld [vmem:[#allocation2 + $0x1c8] sm:$0xff]
  %v388 = vld [vmem:[#allocation2 + $0x1d0] sm:$0xff]
  %v389 = vld [vmem:[#allocation2 + $0x1d8] sm:$0xff]
  %v390 = vld [vmem:[#allocation2 + $0x1e0] sm:$0xff]
  %v391 = vld [vmem:[#allocation2 + $0x1e8] sm:$0xff]
  %v392 = vld [vmem:[#allocation2 + $0x1f0] sm:$0xff]
  %v393 = vld [vmem:[#allocation2 + $0x1f8] sm:$0xff]
  %395 = vset.pattern.permute.xlu0 0
  %396 = vperm.xlu0 %395, %v68
  %v397 = vpop.permute.xlu0 %396
  %399 = vmatpush.msra.mxu0 %v390
  %400 = vmatpush.msra.mxu0 %v386
  %401 = vmatpush.msra.mxu0 %v382
  %402 = vmatpush.msra.mxu0 %v378
  %403 = vmatpush.msra.mxu0 %v374
  %404 = vmatpush.msra.mxu0 %v370
  %405 = vmatpush.msra.mxu0 %v366
  %406 = vmatpush.msra.mxu0 %v362
  %407 = vmatpush.msra.mxu0 %v358
  %408 = vmatpush.msra.mxu0 %v354
  %409 = vmatpush.msra.mxu0 %v350
  %410 = vmatpush.msra.mxu0 %v346
  %411 = vmatpush.msra.mxu0 %v342
  %412 = vmatpush.msra.mxu0 %v338
  %413 = vmatpush.msra.mxu0 %v334
  %414 = vmatpush.msra.mxu0 %v330
  %415 = vmatmul.f32.gmra.mxu0 %v67
  %v416 = vpop.f32.mrf.mxu0
  %v417 = vadd.f32 %v397, %v416
  %418 = vdwg.mxu0
  %419 = vmatpush.msra.mxu0 %v391
  %420 = vmatpush.msra.mxu0 %v387
  %421 = vmatpush.msra.mxu0 %v383
  %422 = vmatpush.msra.mxu0 %v379
  %423 = vmatpush.msra.mxu0 %v375
  %424 = vmatpush.msra.mxu0 %v371
  %425 = vmatpush.msra.mxu0 %v367
  %426 = vmatpush.msra.mxu0 %v363
  %427 = vmatpush.msra.mxu0 %v359
  %428 = vmatpush.msra.mxu0 %v355
  %429 = vmatpush.msra.mxu0 %v351
  %430 = vmatpush.msra.mxu0 %v347
  %431 = vmatpush.msra.mxu0 %v343
  %432 = vmatpush.msra.mxu0 %v339
  %433 = vmatpush.msra.mxu0 %v335
  %434 = vmatpush.msra.mxu0 %v331
  %435 = vmatmul.f32.gmra.mxu0 %v67
  %v436 = vpop.f32.mrf.mxu0
  %v437 = vadd.f32 %v397, %v436
  %438 = vdwg.mxu0
  %439 = vmatpush.msra.mxu0 %v392
  %440 = vmatpush.msra.mxu0 %v388
  %441 = vmatpush.msra.mxu0 %v384
  %442 = vmatpush.msra.mxu0 %v380
  %443 = vmatpush.msra.mxu0 %v376
  %444 = vmatpush.msra.mxu0 %v372
  %445 = vmatpush.msra.mxu0 %v368
  %446 = vmatpush.msra.mxu0 %v364
  %447 = vmatpush.msra.mxu0 %v360
  %448 = vmatpush.msra.mxu0 %v356
  %449 = vmatpush.msra.mxu0 %v352
  %450 = vmatpush.msra.mxu0 %v348
  %451 = vmatpush.msra.mxu0 %v344
  %452 = vmatpush.msra.mxu0 %v340
  %453 = vmatpush.msra.mxu0 %v336
  %454 = vmatpush.msra.mxu0 %v332
  %455 = vmatmul.f32.gmra.mxu0 %v67
  %v456 = vpop.f32.mrf.mxu0
  %v457 = vadd.f32 %v397, %v456
  %458 = vdwg.mxu0
  %459 = vmatpush.msra.mxu0 %v393
  %460 = vmatpush.msra.mxu0 %v389
  %461 = vmatpush.msra.mxu0 %v385
  %462 = vmatpush.msra.mxu0 %v381
  %463 = vmatpush.msra.mxu0 %v377
  %464 = vmatpush.msra.mxu0 %v373
  %465 = vmatpush.msra.mxu0 %v369
  %466 = vmatpush.msra.mxu0 %v365
  %467 = vmatpush.msra.mxu0 %v361
  %468 = vmatpush.msra.mxu0 %v357
  %469 = vmatpush.msra.mxu0 %v353
  %470 = vmatpush.msra.mxu0 %v349
  %471 = vmatpush.msra.mxu0 %v345
  %472 = vmatpush.msra.mxu0 %v341
  %473 = vmatpush.msra.mxu0 %v337
  %474 = vmatpush.msra.mxu0 %v333
  %475 = vmatmul.f32.gmra.mxu0 %v67
  %v476 = vpop.f32.mrf.mxu0
  %v477 = vadd.f32 %v397, %v476
  %478 = vdwg.mxu0
  %v479 = vld [vmem:[%s4] sm:$0xff]
  %v480 = vld [vmem:[%s5] sm:$0xff]
  %v481 = vadd.f32 %v417, %v437
  %v482 = vadd.f32 %v481, %v457
  %v483 = vadd.f32 %v482, %v477
  %484 = vadd.xlane.f32.xlu0 %v483
  %v485 = vpop.xlane.xlu0 %484
  %v486 = vmul.f32 %v485, 0.001953125
  %v487 = vmul.f32 %v417, %v417
  %v488 = vmul.f32 %v437, %v437
  %v489 = vmul.f32 %v457, %v457
  %v490 = vmul.f32 %v477, %v477
  %v491 = vadd.f32 %v487, %v488
  %v492 = vadd.f32 %v491, %v489
  %v493 = vadd.f32 %v492, %v490
  %494 = vadd.xlane.f32.xlu0 %v493
  %v495 = vpop.xlane.xlu0 %494
  %v496 = vmul.f32 %v495, 0.001953125
  %v497 = vmul.f32 %v486, %v486
  %v498 = vsub.f32 %v496, %v497
  %v499 = vmax.f32 %v498, 0.0
  %v500 = vadd.f32 %v499, 1e-05
  %v501 = vrsqrt.pop %v500
  %v502 = vmul.f32 %v501, %v500
  %v503 = vmul.f32 %v502, %v501
  %v504 = vmul.f32 0.5, %v503
  %v505 = vsub.f32 1.5, %v504
  %v506 = vmul.f32 %v501, %v505
  %vm507 = vweird.f32 %v500
  %vm508 = vweird.f32 %v501
  %vm509 = vmor %vm507, %vm508
  %v510 = vsel %vm509, %v501, %v506
  %v511 = vmul.f32 %v479, %v510
  %v512 = vmul.f32 %v486, %v511
  %v513 = vsub.f32 %v480, %v512
  %515 = vset.pattern.permute.xlu0 0
  %516 = vperm.xlu0 %515, %v511
  %v517 = vpop.permute.xlu0 %516
  %v519 = vmul.f32 %v417, %v517
  %v520 = vmul.f32 %v437, %v517
  %v521 = vmul.f32 %v457, %v517
  %v522 = vmul.f32 %v477, %v517
  %524 = vset.pattern.permute.xlu0 0
  %525 = vperm.xlu0 %524, %v513
  %v526 = vpop.permute.xlu0 %525
  %v528 = vadd.f32 %v519, %v526
  %v529 = vadd.f32 %v520, %v526
  %v530 = vadd.f32 %v521, %v526
  %v531 = vadd.f32 %v522, %v526
  %v532 = vmax.f32 %v528, 0.0
  %v533 = vmax.f32 %v529, 0.0
  %v534 = vmax.f32 %v530, 0.0
  %v535 = vmax.f32 %v531, 0.0
  %v536 = vld [vmem:[%s6] sm:$0xff]
  %v537 = vld [vmem:[%s7] sm:$0xff]
  %538 = vrot.lane.b32.xlu0 %v532, 17
  %v539 = vpop.permute.xlu0 %538
  %540 = vrot.lane.b32.xlu0 %v533, 17
  %v541 = vpop.permute.xlu0 %540
  %542 = vrot.lane.b32.xlu0 %v534, 17
  %v543 = vpop.permute.xlu0 %542
  %544 = vrot.lane.b32.xlu0 %v535, 17
  %v545 = vpop.permute.xlu0 %544
  %v546 = vsel %vm79, %v543, %v545
  %v547 = vsel %vm79, %v541, %v543
  %v548 = vsel %vm79, %v539, %v541
  %v549 = vsel %vm79, %v545, %v539
  %v550 = vld [vmem:[%s1] ss:$8 sm:$0xf]
  %v552 = vperm.slane %v550, 0
  %v553 = vperm.slane %v550, 1
  %v554 = vperm.slane %v550, 2
  %v555 = vperm.slane %v550, 3
  %v560 = vmul.f32 %v549, %v552
  %v561 = vmul.f32 %v548, %v553
  %v562 = vmul.f32 %v547, %v554
  %v563 = vmul.f32 %v546, %v555
  %564 = vst [vmem:[#allocation2] sm:$0xff] %v560
  %565 = vst [vmem:[#allocation2 + $0x8] sm:$0xff] %v561
  %566 = vst [vmem:[#allocation2 + $0x10] sm:$0xff] %v562
  %567 = vst [vmem:[#allocation2 + $0x18] sm:$0xff] %v563
  %568 = vrot.lane.b32.xlu0 %v532, 16
  %v569 = vpop.permute.xlu0 %568
  %570 = vrot.lane.b32.xlu0 %v533, 16
  %v571 = vpop.permute.xlu0 %570
  %572 = vrot.lane.b32.xlu0 %v534, 16
  %v573 = vpop.permute.xlu0 %572
  %574 = vrot.lane.b32.xlu0 %v535, 16
  %v575 = vpop.permute.xlu0 %574
  %v576 = vsel %vm110, %v573, %v575
  %v577 = vsel %vm110, %v571, %v573
  %v578 = vsel %vm110, %v569, %v571
  %v579 = vsel %vm110, %v575, %v569
  %v580 = vld [vmem:[%s115] ss:$8 sm:$0xf]
  %v582 = vperm.slane %v580, 0
  %v583 = vperm.slane %v580, 1
  %v584 = vperm.slane %v580, 2
  %v585 = vperm.slane %v580, 3
  %v590 = vmul.f32 %v579, %v582
  %v591 = vmul.f32 %v578, %v583
  %v592 = vmul.f32 %v577, %v584
  %v593 = vmul.f32 %v576, %v585
  %594 = vst [vmem:[#allocation2 + $0x20] sm:$0xff] %v590
  %595 = vst [vmem:[#allocation2 + $0x28] sm:$0xff] %v591
  %596 = vst [vmem:[#allocation2 + $0x30] sm:$0xff] %v592
  %597 = vst [vmem:[#allocation2 + $0x38] sm:$0xff] %v593
  %598 = vrot.lane.b32.xlu0 %v532, 15
  %v599 = vpop.permute.xlu0 %598
  %600 = vrot.lane.b32.xlu0 %v533, 15
  %v601 = vpop.permute.xlu0 %600
  %602 = vrot.lane.b32.xlu0 %v534, 15
  %v603 = vpop.permute.xlu0 %602
  %604 = vrot.lane.b32.xlu0 %v535, 15
  %v605 = vpop.permute.xlu0 %604
  %v606 = vsel %vm142, %v603, %v605
  %v607 = vsel %vm142, %v601, %v603
  %v608 = vsel %vm142, %v599, %v601
  %v609 = vsel %vm142, %v605, %v599
  %v610 = vld [vmem:[%s147] ss:$8 sm:$0xf]
  %v612 = vperm.slane %v610, 0
  %v613 = vperm.slane %v610, 1
  %v614 = vperm.slane %v610, 2
  %v615 = vperm.slane %v610, 3
  %v620 = vmul.f32 %v609, %v612
  %v621 = vmul.f32 %v608, %v613
  %v622 = vmul.f32 %v607, %v614
  %v623 = vmul.f32 %v606, %v615
  %624 = vst [vmem:[#allocation2 + $0x40] sm:$0xff] %v620
  %625 = vst [vmem:[#allocation2 + $0x48] sm:$0xff] %v621
  %626 = vst [vmem:[#allocation2 + $0x50] sm:$0xff] %v622
  %627 = vst [vmem:[#allocation2 + $0x58] sm:$0xff] %v623
  %628 = vrot.lane.b32.xlu0 %v532, 1
  %v629 = vpop.permute.xlu0 %628
  %630 = vrot.lane.b32.xlu0 %v533, 1
  %v631 = vpop.permute.xlu0 %630
  %632 = vrot.lane.b32.xlu0 %v534, 1
  %v633 = vpop.permute.xlu0 %632
  %634 = vrot.lane.b32.xlu0 %v535, 1
  %v635 = vpop.permute.xlu0 %634
  %v636 = vsel %vm174, %v633, %v635
  %v637 = vsel %vm174, %v631, %v633
  %v638 = vsel %vm174, %v629, %v631
  %v639 = vsel %vm174, %v635, %v629
  %v640 = vld [vmem:[%s179] ss:$8 sm:$0xf]
  %v642 = vperm.slane %v640, 0
  %v643 = vperm.slane %v640, 1
  %v644 = vperm.slane %v640, 2
  %v645 = vperm.slane %v640, 3
  %v650 = vmul.f32 %v639, %v642
  %v651 = vmul.f32 %v638, %v643
  %v652 = vmul.f32 %v637, %v644
  %v653 = vmul.f32 %v636, %v645
  %654 = vst [vmem:[#allocation2 + $0x60] sm:$0xff] %v650
  %655 = vst [vmem:[#allocation2 + $0x68] sm:$0xff] %v651
  %656 = vst [vmem:[#allocation2 + $0x70] sm:$0xff] %v652
  %657 = vst [vmem:[#allocation2 + $0x78] sm:$0xff] %v653
  %658 = vst [vmem:[#allocation2 + $0x80] sm:$0xff] %v532
  %659 = vst [vmem:[#allocation2 + $0x88] sm:$0xff] %v533
  %660 = vst [vmem:[#allocation2 + $0x90] sm:$0xff] %v534
  %661 = vst [vmem:[#allocation2 + $0x98] sm:$0xff] %v535
  %662 = vrot.lane.b32.xlu0 %v532, 127
  %v663 = vpop.permute.xlu0 %662
  %664 = vrot.lane.b32.xlu0 %v533, 127
  %v665 = vpop.permute.xlu0 %664
  %666 = vrot.lane.b32.xlu0 %v534, 127
  %v667 = vpop.permute.xlu0 %666
  %668 = vrot.lane.b32.xlu0 %v535, 127
  %v669 = vpop.permute.xlu0 %668
  %v670 = vsel %vm210, %v667, %v669
  %v671 = vsel %vm210, %v665, %v667
  %v672 = vsel %vm210, %v663, %v665
  %v673 = vsel %vm210, %v669, %v663
  %v674 = vld [vmem:[%s215] ss:$8 sm:$0xf]
  %v676 = vperm.slane %v674, 0
  %v677 = vperm.slane %v674, 1
  %v678 = vperm.slane %v674, 2
  %v679 = vperm.slane %v674, 3
  %v684 = vmul.f32 %v672, %v676
  %v685 = vmul.f32 %v671, %v677
  %v686 = vmul.f32 %v670, %v678
  %v687 = vmul.f32 %v673, %v679
  %688 = vst [vmem:[#allocation2 + $0xa0] sm:$0xff] %v684
  %689 = vst [vmem:[#allocation2 + $0xa8] sm:$0xff] %v685
  %690 = vst [vmem:[#allocation2 + $0xb0] sm:$0xff] %v686
  %691 = vst [vmem:[#allocation2 + $0xb8] sm:$0xff] %v687
  %692 = vrot.lane.b32.xlu0 %v532, 113
  %v693 = vpop.permute.xlu0 %692
  %694 = vrot.lane.b32.xlu0 %v533, 113
  %v695 = vpop.permute.xlu0 %694
  %696 = vrot.lane.b32.xlu0 %v534, 113
  %v697 = vpop.permute.xlu0 %696
  %698 = vrot.lane.b32.xlu0 %v535, 113
  %v699 = vpop.permute.xlu0 %698
  %v700 = vsel %vm242, %v697, %v699
  %v701 = vsel %vm242, %v695, %v697
  %v702 = vsel %vm242, %v693, %v695
  %v703 = vsel %vm242, %v699, %v693
  %v704 = vld [vmem:[%s247] ss:$8 sm:$0xf]
  %v706 = vperm.slane %v704, 0
  %v707 = vperm.slane %v704, 1
  %v708 = vperm.slane %v704, 2
  %v709 = vperm.slane %v704, 3
  %v714 = vmul.f32 %v702, %v706
  %v715 = vmul.f32 %v701, %v707
  %v716 = vmul.f32 %v700, %v708
  %v717 = vmul.f32 %v703, %v709
  %718 = vst [vmem:[#allocation2 + $0xc0] sm:$0xff] %v714
  %719 = vst [vmem:[#allocation2 + $0xc8] sm:$0xff] %v715
  %720 = vst [vmem:[#allocation2 + $0xd0] sm:$0xff] %v716
  %721 = vst [vmem:[#allocation2 + $0xd8] sm:$0xff] %v717
  %722 = vrot.lane.b32.xlu0 %v532, 112
  %v723 = vpop.permute.xlu0 %722
  %724 = vrot.lane.b32.xlu0 %v533, 112
  %v725 = vpop.permute.xlu0 %724
  %726 = vrot.lane.b32.xlu0 %v534, 112
  %v727 = vpop.permute.xlu0 %726
  %728 = vrot.lane.b32.xlu0 %v535, 112
  %v729 = vpop.permute.xlu0 %728
  %v730 = vsel %vm274, %v727, %v729
  %v731 = vsel %vm274, %v725, %v727
  %v732 = vsel %vm274, %v723, %v725
  %v733 = vsel %vm274, %v729, %v723
  %v734 = vld [vmem:[%s279] ss:$8 sm:$0xf]
  %v736 = vperm.slane %v734, 0
  %v737 = vperm.slane %v734, 1
  %v738 = vperm.slane %v734, 2
  %v739 = vperm.slane %v734, 3
  %v744 = vmul.f32 %v732, %v736
  %v745 = vmul.f32 %v731, %v737
  %v746 = vmul.f32 %v730, %v738
  %v747 = vmul.f32 %v733, %v739
  %748 = vst [vmem:[#allocation2 + $0xe0] sm:$0xff] %v744
  %749 = vst [vmem:[#allocation2 + $0xe8] sm:$0xff] %v745
  %750 = vst [vmem:[#allocation2 + $0xf0] sm:$0xff] %v746
  %751 = vst [vmem:[#allocation2 + $0xf8] sm:$0xff] %v747
  %752 = vrot.lane.b32.xlu0 %v532, 111
  %v753 = vpop.permute.xlu0 %752
  %754 = vrot.lane.b32.xlu0 %v533, 111
  %v755 = vpop.permute.xlu0 %754
  %756 = vrot.lane.b32.xlu0 %v534, 111
  %v757 = vpop.permute.xlu0 %756
  %758 = vrot.lane.b32.xlu0 %v535, 111
  %v759 = vpop.permute.xlu0 %758
  %v760 = vsel %vm306, %v757, %v759
  %v761 = vsel %vm306, %v755, %v757
  %v762 = vsel %vm306, %v753, %v755
  %v763 = vsel %vm306, %v759, %v753
  %v764 = vld [vmem:[%s311] ss:$8 sm:$0xf]
  %v766 = vperm.slane %v764, 0
  %v767 = vperm.slane %v764, 1
  %v768 = vperm.slane %v764, 2
  %v769 = vperm.slane %v764, 3
  %v774 = vmul.f32 %v762, %v766
  %v775 = vmul.f32 %v761, %v767
  %v776 = vmul.f32 %v760, %v768
  %v777 = vmul.f32 %v763, %v769
  %778 = vst [vmem:[#allocation2 + $0x100] sm:$0xff] %v774
  %779 = vst [vmem:[#allocation2 + $0x108] sm:$0xff] %v775
  %780 = vst [vmem:[#allocation2 + $0x110] sm:$0xff] %v776
  %781 = vst [vmem:[#allocation2 + $0x118] sm:$0xff] %v777
  %v782 = vld [vmem:[#allocation2] sm:$0xff]
  %v783 = vld [vmem:[#allocation2 + $0x8] sm:$0xff]
  %v784 = vld [vmem:[#allocation2 + $0x10] sm:$0xff]
  %v785 = vld [vmem:[#allocation2 + $0x18] sm:$0xff]
  %v786 = vld [vmem:[#allocation2 + $0x20] sm:$0xff]
  %v787 = vld [vmem:[#allocation2 + $0x28] sm:$0xff]
  %v788 = vld [vmem:[#allocation2 + $0x30] sm:$0xff]
  %v789 = vld [vmem:[#allocation2 + $0x38] sm:$0xff]
  %v790 = vld [vmem:[#allocation2 + $0x40] sm:$0xff]
  %v791 = vld [vmem:[#allocation2 + $0x48] sm:$0xff]
  %v792 = vld [vmem:[#allocation2 + $0x50] sm:$0xff]
  %v793 = vld [vmem:[#allocation2 + $0x58] sm:$0xff]
  %v794 = vld [vmem:[#allocation2 + $0x60] sm:$0xff]
  %v795 = vld [vmem:[#allocation2 + $0x68] sm:$0xff]
  %v796 = vld [vmem:[#allocation2 + $0x70] sm:$0xff]
  %v797 = vld [vmem:[#allocation2 + $0x78] sm:$0xff]
  %v798 = vld [vmem:[#allocation2 + $0x80] sm:$0xff]
  %v799 = vld [vmem:[#allocation2 + $0x88] sm:$0xff]
  %v800 = vld [vmem:[#allocation2 + $0x90] sm:$0xff]
  %v801 = vld [vmem:[#allocation2 + $0x98] sm:$0xff]
  %v802 = vld [vmem:[#allocation2 + $0xa0] sm:$0xff]
  %v803 = vld [vmem:[#allocation2 + $0xa8] sm:$0xff]
  %v804 = vld [vmem:[#allocation2 + $0xb0] sm:$0xff]
  %v805 = vld [vmem:[#allocation2 + $0xb8] sm:$0xff]
  %v806 = vld [vmem:[#allocation2 + $0xc0] sm:$0xff]
  %v807 = vld [vmem:[#allocation2 + $0xc8] sm:$0xff]
  %v808 = vld [vmem:[#allocation2 + $0xd0] sm:$0xff]
  %v809 = vld [vmem:[#allocation2 + $0xd8] sm:$0xff]
  %v810 = vld [vmem:[#allocation2 + $0xe0] sm:$0xff]
  %v811 = vld [vmem:[#allocation2 + $0xe8] sm:$0xff]
  %v812 = vld [vmem:[#allocation2 + $0xf0] sm:$0xff]
  %v813 = vld [vmem:[#allocation2 + $0xf8] sm:$0xff]
  %v814 = vld [vmem:[#allocation2 + $0x100] sm:$0xff]
  %v815 = vld [vmem:[#allocation2 + $0x108] sm:$0xff]
  %v816 = vld [vmem:[#allocation2 + $0x110] sm:$0xff]
  %v817 = vld [vmem:[#allocation2 + $0x118] sm:$0xff]
  %v818 = vld [vmem:[#allocation2 + $0x120] sm:$0xff]
  %v819 = vld [vmem:[#allocation2 + $0x128] sm:$0xff]
  %v820 = vld [vmem:[#allocation2 + $0x130] sm:$0xff]
  %v821 = vld [vmem:[#allocation2 + $0x138] sm:$0xff]
  %v822 = vld [vmem:[#allocation2 + $0x140] sm:$0xff]
  %v823 = vld [vmem:[#allocation2 + $0x148] sm:$0xff]
  %v824 = vld [vmem:[#allocation2 + $0x150] sm:$0xff]
  %v825 = vld [vmem:[#allocation2 + $0x158] sm:$0xff]
  %v826 = vld [vmem:[#allocation2 + $0x160] sm:$0xff]
  %v827 = vld [vmem:[#allocation2 + $0x168] sm:$0xff]
  %v828 = vld [vmem:[#allocation2 + $0x170] sm:$0xff]
  %v829 = vld [vmem:[#allocation2 + $0x178] sm:$0xff]
  %v830 = vld [vmem:[#allocation2 + $0x180] sm:$0xff]
  %v831 = vld [vmem:[#allocation2 + $0x188] sm:$0xff]
  %v832 = vld [vmem:[#allocation2 + $0x190] sm:$0xff]
  %v833 = vld [vmem:[#allocation2 + $0x198] sm:$0xff]
  %v834 = vld [vmem:[#allocation2 + $0x1a0] sm:$0xff]
  %v835 = vld [vmem:[#allocation2 + $0x1a8] sm:$0xff]
  %v836 = vld [vmem:[#allocation2 + $0x1b0] sm:$0xff]
  %v837 = vld [vmem:[#allocation2 + $0x1b8] sm:$0xff]
  %v838 = vld [vmem:[#allocation2 + $0x1c0] sm:$0xff]
  %v839 = vld [vmem:[#allocation2 + $0x1c8] sm:$0xff]
  %v840 = vld [vmem:[#allocation2 + $0x1d0] sm:$0xff]
  %v841 = vld [vmem:[#allocation2 + $0x1d8] sm:$0xff]
  %v842 = vld [vmem:[#allocation2 + $0x1e0] sm:$0xff]
  %v843 = vld [vmem:[#allocation2 + $0x1e8] sm:$0xff]
  %v844 = vld [vmem:[#allocation2 + $0x1f0] sm:$0xff]
  %v845 = vld [vmem:[#allocation2 + $0x1f8] sm:$0xff]
  %847 = vset.pattern.permute.xlu0 0
  %848 = vperm.xlu0 %847, %v537
  %v849 = vpop.permute.xlu0 %848
  %851 = vmatpush.msra.mxu0 %v842
  %852 = vmatpush.msra.mxu0 %v838
  %853 = vmatpush.msra.mxu0 %v834
  %854 = vmatpush.msra.mxu0 %v830
  %855 = vmatpush.msra.mxu0 %v826
  %856 = vmatpush.msra.mxu0 %v822
  %857 = vmatpush.msra.mxu0 %v818
  %858 = vmatpush.msra.mxu0 %v814
  %859 = vmatpush.msra.mxu0 %v810
  %860 = vmatpush.msra.mxu0 %v806
  %861 = vmatpush.msra.mxu0 %v802
  %862 = vmatpush.msra.mxu0 %v798
  %863 = vmatpush.msra.mxu0 %v794
  %864 = vmatpush.msra.mxu0 %v790
  %865 = vmatpush.msra.mxu0 %v786
  %866 = vmatpush.msra.mxu0 %v782
  %867 = vmatmul.f32.gmra.mxu0 %v536
  %v868 = vpop.f32.mrf.mxu0
  %v869 = vadd.f32 %v849, %v868
  %870 = vdwg.mxu0
  %871 = vmatpush.msra.mxu0 %v843
  %872 = vmatpush.msra.mxu0 %v839
  %873 = vmatpush.msra.mxu0 %v835
  %874 = vmatpush.msra.mxu0 %v831
  %875 = vmatpush.msra.mxu0 %v827
  %876 = vmatpush.msra.mxu0 %v823
  %877 = vmatpush.msra.mxu0 %v819
  %878 = vmatpush.msra.mxu0 %v815
  %879 = vmatpush.msra.mxu0 %v811
  %880 = vmatpush.msra.mxu0 %v807
  %881 = vmatpush.msra.mxu0 %v803
  %882 = vmatpush.msra.mxu0 %v799
  %883 = vmatpush.msra.mxu0 %v795
  %884 = vmatpush.msra.mxu0 %v791
  %885 = vmatpush.msra.mxu0 %v787
  %886 = vmatpush.msra.mxu0 %v783
  %887 = vmatmul.f32.gmra.mxu0 %v536
  %v888 = vpop.f32.mrf.mxu0
  %v889 = vadd.f32 %v849, %v888
  %890 = vdwg.mxu0
  %891 = vmatpush.msra.mxu0 %v844
  %892 = vmatpush.msra.mxu0 %v840
  %893 = vmatpush.msra.mxu0 %v836
  %894 = vmatpush.msra.mxu0 %v832
  %895 = vmatpush.msra.mxu0 %v828
  %896 = vmatpush.msra.mxu0 %v824
  %897 = vmatpush.msra.mxu0 %v820
  %898 = vmatpush.msra.mxu0 %v816
  %899 = vmatpush.msra.mxu0 %v812
  %900 = vmatpush.msra.mxu0 %v808
  %901 = vmatpush.msra.mxu0 %v804
  %902 = vmatpush.msra.mxu0 %v800
  %903 = vmatpush.msra.mxu0 %v796
  %904 = vmatpush.msra.mxu0 %v792
  %905 = vmatpush.msra.mxu0 %v788
  %906 = vmatpush.msra.mxu0 %v784
  %907 = vmatmul.f32.gmra.mxu0 %v536
  %v908 = vpop.f32.mrf.mxu0
  %v909 = vadd.f32 %v849, %v908
  %910 = vdwg.mxu0
  %911 = vmatpush.msra.mxu0 %v845
  %912 = vmatpush.msra.mxu0 %v841
  %913 = vmatpush.msra.mxu0 %v837
  %914 = vmatpush.msra.mxu0 %v833
  %915 = vmatpush.msra.mxu0 %v829
  %916 = vmatpush.msra.mxu0 %v825
  %917 = vmatpush.msra.mxu0 %v821
  %918 = vmatpush.msra.mxu0 %v817
  %919 = vmatpush.msra.mxu0 %v813
  %920 = vmatpush.msra.mxu0 %v809
  %921 = vmatpush.msra.mxu0 %v805
  %922 = vmatpush.msra.mxu0 %v801
  %923 = vmatpush.msra.mxu0 %v797
  %924 = vmatpush.msra.mxu0 %v793
  %925 = vmatpush.msra.mxu0 %v789
  %926 = vmatpush.msra.mxu0 %v785
  %927 = vmatmul.f32.gmra.mxu0 %v536
  %v928 = vpop.f32.mrf.mxu0
  %v929 = vadd.f32 %v849, %v928
  %930 = vdwg.mxu0
  %v931 = vld [vmem:[%s8] sm:$0xff]
  %v932 = vld [vmem:[%s9] sm:$0xff]
  %v933 = vadd.f32 %v869, %v889
  %v934 = vadd.f32 %v933, %v909
  %v935 = vadd.f32 %v934, %v929
  %936 = vadd.xlane.f32.xlu0 %v935
  %v937 = vpop.xlane.xlu0 %936
  %v938 = vmul.f32 %v937, 0.001953125
  %v939 = vmul.f32 %v869, %v869
  %v940 = vmul.f32 %v889, %v889
  %v941 = vmul.f32 %v909, %v909
  %v942 = vmul.f32 %v929, %v929
  %v943 = vadd.f32 %v939, %v940
  %v944 = vadd.f32 %v943, %v941
  %v945 = vadd.f32 %v944, %v942
  %946 = vadd.xlane.f32.xlu0 %v945
  %v947 = vpop.xlane.xlu0 %946
  %v948 = vmul.f32 %v947, 0.001953125
  %v949 = vmul.f32 %v938, %v938
  %v950 = vsub.f32 %v948, %v949
  %v951 = vmax.f32 %v950, 0.0
  %v952 = vadd.f32 %v951, 1e-05
  %v953 = vrsqrt.pop %v952
  %v954 = vmul.f32 %v953, %v952
  %v955 = vmul.f32 %v954, %v953
  %v956 = vmul.f32 0.5, %v955
  %v957 = vsub.f32 1.5, %v956
  %v958 = vmul.f32 %v953, %v957
  %vm959 = vweird.f32 %v952
  %vm960 = vweird.f32 %v953
  %vm961 = vmor %vm959, %vm960
  %v962 = vsel %vm961, %v953, %v958
  %v963 = vmul.f32 %v931, %v962
  %v964 = vmul.f32 %v938, %v963
  %v965 = vsub.f32 %v932, %v964
  %967 = vset.pattern.permute.xlu0 0
  %968 = vperm.xlu0 %967, %v963
  %v969 = vpop.permute.xlu0 %968
  %v971 = vmul.f32 %v869, %v969
  %v972 = vmul.f32 %v889, %v969
  %v973 = vmul.f32 %v909, %v969
  %v974 = vmul.f32 %v929, %v969
  %976 = vset.pattern.permute.xlu0 0
  %977 = vperm.xlu0 %976, %v965
  %v978 = vpop.permute.xlu0 %977
  %v980 = vadd.f32 %v971, %v978
  %v981 = vadd.f32 %v972, %v978
  %v982 = vadd.f32 %v973, %v978
  %v983 = vadd.f32 %v974, %v978
  %v984 = vadd.f32 %v63, %v980
  %v985 = vadd.f32 %v64, %v981
  %v986 = vadd.f32 %v65, %v982
  %v987 = vadd.f32 %v66, %v983
  %v988 = vmax.f32 %v984, 0.0
  %v989 = vmax.f32 %v985, 0.0
  %v990 = vmax.f32 %v986, 0.0
  %v991 = vmax.f32 %v987, 0.0
  %s992 = scalar_lea.vmem %s2, 8
  %v993 = vld [vmem:[%s992] sm:$0xff]
  %s994 = scalar_lea.vmem %s3, 8
  %v995 = vld [vmem:[%s994] sm:$0xff]
  %996 = vrot.lane.b32.xlu0 %v988, 17
  %v997 = vpop.permute.xlu0 %996
  %998 = vrot.lane.b32.xlu0 %v989, 17
  %v999 = vpop.permute.xlu0 %998
  %1000 = vrot.lane.b32.xlu0 %v990, 17
  %v1001 = vpop.permute.xlu0 %1000
  %1002 = vrot.lane.b32.xlu0 %v991, 17
  %v1003 = vpop.permute.xlu0 %1002
  %v1004 = vsel %vm79, %v1001, %v1003
  %v1005 = vsel %vm79, %v999, %v1001
  %v1006 = vsel %vm79, %v997, %v999
  %v1007 = vsel %vm79, %v1003, %v997
  %v1008 = vld [vmem:[%s1] ss:$8 sm:$0xf]
  %v1010 = vperm.slane %v1008, 0
  %v1011 = vperm.slane %v1008, 1
  %v1012 = vperm.slane %v1008, 2
  %v1013 = vperm.slane %v1008, 3
  %v1018 = vmul.f32 %v1007, %v1010
  %v1019 = vmul.f32 %v1006, %v1011
  %v1020 = vmul.f32 %v1005, %v1012
  %v1021 = vmul.f32 %v1004, %v1013
  %1022 = vst [vmem:[#allocation2] sm:$0xff] %v1018
  %1023 = vst [vmem:[#allocation2 + $0x8] sm:$0xff] %v1019
  %1024 = vst [vmem:[#allocation2 + $0x10] sm:$0xff] %v1020
  %1025 = vst [vmem:[#allocation2 + $0x18] sm:$0xff] %v1021
  %1026 = vrot.lane.b32.xlu0 %v988, 16
  %v1027 = vpop.permute.xlu0 %1026
  %1028 = vrot.lane.b32.xlu0 %v989, 16
  %v1029 = vpop.permute.xlu0 %1028
  %1030 = vrot.lane.b32.xlu0 %v990, 16
  %v1031 = vpop.permute.xlu0 %1030
  %1032 = vrot.lane.b32.xlu0 %v991, 16
  %v1033 = vpop.permute.xlu0 %1032
  %v1034 = vsel %vm110, %v1031, %v1033
  %v1035 = vsel %vm110, %v1029, %v1031
  %v1036 = vsel %vm110, %v1027, %v1029
  %v1037 = vsel %vm110, %v1033, %v1027
  %v1038 = vld [vmem:[%s115] ss:$8 sm:$0xf]
  %v1040 = vperm.slane %v1038, 0
  %v1041 = vperm.slane %v1038, 1
  %v1042 = vperm.slane %v1038, 2
  %v1043 = vperm.slane %v1038, 3
  %v1048 = vmul.f32 %v1037, %v1040
  %v1049 = vmul.f32 %v1036, %v1041
  %v1050 = vmul.f32 %v1035, %v1042
  %v1051 = vmul.f32 %v1034, %v1043
  %1052 = vst [vmem:[#allocation2 + $0x20] sm:$0xff] %v1048
  %1053 = vst [vmem:[#allocation2 + $0x28] sm:$0xff] %v1049
  %1054 = vst [vmem:[#allocation2 + $0x30] sm:$0xff] %v1050
  %1055 = vst [vmem:[#allocation2 + $0x38] sm:$0xff] %v1051
  %1056 = vrot.lane.b32.xlu0 %v988, 15
  %v1057 = vpop.permute.xlu0 %1056
  %1058 = vrot.lane.b32.xlu0 %v989, 15
  %v1059 = vpop.permute.xlu0 %1058
  %1060 = vrot.lane.b32.xlu0 %v990, 15
  %v1061 = vpop.permute.xlu0 %1060
  %1062 = vrot.lane.b32.xlu0 %v991, 15
  %v1063 = vpop.permute.xlu0 %1062
  %v1064 = vsel %vm142, %v1061, %v1063
  %v1065 = vsel %vm142, %v1059, %v1061
  %v1066 = vsel %vm142, %v1057, %v1059
  %v1067 = vsel %vm142, %v1063, %v1057
  %v1068 = vld [vmem:[%s147] ss:$8 sm:$0xf]
  %v1070 = vperm.slane %v1068, 0
  %v1071 = vperm.slane %v1068, 1
  %v1072 = vperm.slane %v1068, 2
  %v1073 = vperm.slane %v1068, 3
  %v1078 = vmul.f32 %v1067, %v1070
  %v1079 = vmul.f32 %v1066, %v1071
  %v1080 = vmul.f32 %v1065, %v1072
  %v1081 = vmul.f32 %v1064, %v1073
  %1082 = vst [vmem:[#allocation2 + $0x40] sm:$0xff] %v1078
  %1083 = vst [vmem:[#allocation2 + $0x48] sm:$0xff] %v1079
  %1084 = vst [vmem:[#allocation2 + $0x50] sm:$0xff] %v1080
  %1085 = vst [vmem:[#allocation2 + $0x58] sm:$0xff] %v1081
  %1086 = vrot.lane.b32.xlu0 %v988, 1
  %v1087 = vpop.permute.xlu0 %1086
  %1088 = vrot.lane.b32.xlu0 %v989, 1
  %v1089 = vpop.permute.xlu0 %1088
  %1090 = vrot.lane.b32.xlu0 %v990, 1
  %v1091 = vpop.permute.xlu0 %1090
  %1092 = vrot.lane.b32.xlu0 %v991, 1
  %v1093 = vpop.permute.xlu0 %1092
  %v1094 = vsel %vm174, %v1091, %v1093
  %v1095 = vsel %vm174, %v1089, %v1091
  %v1096 = vsel %vm174, %v1087, %v1089
  %v1097 = vsel %vm174, %v1093, %v1087
  %v1098 = vld [vmem:[%s179] ss:$8 sm:$0xf]
  %v1100 = vperm.slane %v1098, 0
  %v1101 = vperm.slane %v1098, 1
  %v1102 = vperm.slane %v1098, 2
  %v1103 = vperm.slane %v1098, 3
  %v1108 = vmul.f32 %v1097, %v1100
  %v1109 = vmul.f32 %v1096, %v1101
  %v1110 = vmul.f32 %v1095, %v1102
  %v1111 = vmul.f32 %v1094, %v1103
  %1112 = vst [vmem:[#allocation2 + $0x60] sm:$0xff] %v1108
  %1113 = vst [vmem:[#allocation2 + $0x68] sm:$0xff] %v1109
  %1114 = vst [vmem:[#allocation2 + $0x70] sm:$0xff] %v1110
  %1115 = vst [vmem:[#allocation2 + $0x78] sm:$0xff] %v1111
  %1116 = vst [vmem:[#allocation2 + $0x80] sm:$0xff] %v988
  %1117 = vst [vmem:[#allocation2 + $0x88] sm:$0xff] %v989
  %1118 = vst [vmem:[#allocation2 + $0x90] sm:$0xff] %v990
  %1119 = vst [vmem:[#allocation2 + $0x98] sm:$0xff] %v991
  %1120 = vrot.lane.b32.xlu0 %v988, 127
  %v1121 = vpop.permute.xlu0 %1120
  %1122 = vrot.lane.b32.xlu0 %v989, 127
  %v1123 = vpop.permute.xlu0 %1122
  %1124 = vrot.lane.b32.xlu0 %v990, 127
  %v1125 = vpop.permute.xlu0 %1124
  %1126 = vrot.lane.b32.xlu0 %v991, 127
  %v1127 = vpop.permute.xlu0 %1126
  %v1128 = vsel %vm210, %v1125, %v1127
  %v1129 = vsel %vm210, %v1123, %v1125
  %v1130 = vsel %vm210, %v1121, %v1123
  %v1131 = vsel %vm210, %v1127, %v1121
  %v1132 = vld [vmem:[%s215] ss:$8 sm:$0xf]
  %v1134 = vperm.slane %v1132, 0
  %v1135 = vperm.slane %v1132, 1
  %v1136 = vperm.slane %v1132, 2
  %v1137 = vperm.slane %v1132, 3
  %v1142 = vmul.f32 %v1130, %v1134
  %v1143 = vmul.f32 %v1129, %v1135
  %v1144 = vmul.f32 %v1128, %v1136
  %v1145 = vmul.f32 %v1131, %v1137
  %1146 = vst [vmem:[#allocation2 + $0xa0] sm:$0xff] %v1142
  %1147 = vst [vmem:[#allocation2 + $0xa8] sm:$0xff] %v1143
  %1148 = vst [vmem:[#allocation2 + $0xb0] sm:$0xff] %v1144
  %1149 = vst [vmem:[#allocation2 + $0xb8] sm:$0xff] %v1145
  %1150 = vrot.lane.b32.xlu0 %v988, 113
  %v1151 = vpop.permute.xlu0 %1150
  %1152 = vrot.lane.b32.xlu0 %v989, 113
  %v1153 = vpop.permute.xlu0 %1152
  %1154 = vrot.lane.b32.xlu0 %v990, 113
  %v1155 = vpop.permute.xlu0 %1154
  %1156 = vrot.lane.b32.xlu0 %v991, 113
  %v1157 = vpop.permute.xlu0 %1156
  %v1158 = vsel %vm242, %v1155, %v1157
  %v1159 = vsel %vm242, %v1153, %v1155
  %v1160 = vsel %vm242, %v1151, %v1153
  %v1161 = vsel %vm242, %v1157, %v1151
  %v1162 = vld [vmem:[%s247] ss:$8 sm:$0xf]
  %v1164 = vperm.slane %v1162, 0
  %v1165 = vperm.slane %v1162, 1
  %v1166 = vperm.slane %v1162, 2
  %v1167 = vperm.slane %v1162, 3
  %v1172 = vmul.f32 %v1160, %v1164
  %v1173 = vmul.f32 %v1159, %v1165
  %v1174 = vmul.f32 %v1158, %v1166
  %v1175 = vmul.f32 %v1161, %v1167
  %1176 = vst [vmem:[#allocation2 + $0xc0] sm:$0xff] %v1172
  %1177 = vst [vmem:[#allocation2 + $0xc8] sm:$0xff] %v1173
  %1178 = vst [vmem:[#allocation2 + $0xd0] sm:$0xff] %v1174
  %1179 = vst [vmem:[#allocation2 + $0xd8] sm:$0xff] %v1175
  %1180 = vrot.lane.b32.xlu0 %v988, 112
  %v1181 = vpop.permute.xlu0 %1180
  %1182 = vrot.lane.b32.xlu0 %v989, 112
  %v1183 = vpop.permute.xlu0 %1182
  %1184 = vrot.lane.b32.xlu0 %v990, 112
  %v1185 = vpop.permute.xlu0 %1184
  %1186 = vrot.lane.b32.xlu0 %v991, 112
  %v1187 = vpop.permute.xlu0 %1186
  %v1188 = vsel %vm274, %v1185, %v1187
  %v1189 = vsel %vm274, %v1183, %v1185
  %v1190 = vsel %vm274, %v1181, %v1183
  %v1191 = vsel %vm274, %v1187, %v1181
  %v1192 = vld [vmem:[%s279] ss:$8 sm:$0xf]
  %v1194 = vperm.slane %v1192, 0
  %v1195 = vperm.slane %v1192, 1
  %v1196 = vperm.slane %v1192, 2
  %v1197 = vperm.slane %v1192, 3
  %v1202 = vmul.f32 %v1190, %v1194
  %v1203 = vmul.f32 %v1189, %v1195
  %v1204 = vmul.f32 %v1188, %v1196
  %v1205 = vmul.f32 %v1191, %v1197
  %1206 = vst [vmem:[#allocation2 + $0xe0] sm:$0xff] %v1202
  %1207 = vst [vmem:[#allocation2 + $0xe8] sm:$0xff] %v1203
  %1208 = vst [vmem:[#allocation2 + $0xf0] sm:$0xff] %v1204
  %1209 = vst [vmem:[#allocation2 + $0xf8] sm:$0xff] %v1205
  %1210 = vrot.lane.b32.xlu0 %v988, 111
  %v1211 = vpop.permute.xlu0 %1210
  %1212 = vrot.lane.b32.xlu0 %v989, 111
  %v1213 = vpop.permute.xlu0 %1212
  %1214 = vrot.lane.b32.xlu0 %v990, 111
  %v1215 = vpop.permute.xlu0 %1214
  %1216 = vrot.lane.b32.xlu0 %v991, 111
  %v1217 = vpop.permute.xlu0 %1216
  %v1218 = vsel %vm306, %v1215, %v1217
  %v1219 = vsel %vm306, %v1213, %v1215
  %v1220 = vsel %vm306, %v1211, %v1213
  %v1221 = vsel %vm306, %v1217, %v1211
  %v1222 = vld [vmem:[%s311] ss:$8 sm:$0xf]
  %v1224 = vperm.slane %v1222, 0
  %v1225 = vperm.slane %v1222, 1
  %v1226 = vperm.slane %v1222, 2
  %v1227 = vperm.slane %v1222, 3
  %v1232 = vmul.f32 %v1220, %v1224
  %v1233 = vmul.f32 %v1219, %v1225
  %v1234 = vmul.f32 %v1218, %v1226
  %v1235 = vmul.f32 %v1221, %v1227
  %1236 = vst [vmem:[#allocation2 + $0x100] sm:$0xff] %v1232
  %1237 = vst [vmem:[#allocation2 + $0x108] sm:$0xff] %v1233
  %1238 = vst [vmem:[#allocation2 + $0x110] sm:$0xff] %v1234
  %1239 = vst [vmem:[#allocation2 + $0x118] sm:$0xff] %v1235
  %v1240 = vld [vmem:[#allocation2] sm:$0xff]
  %v1241 = vld [vmem:[#allocation2 + $0x8] sm:$0xff]
  %v1242 = vld [vmem:[#allocation2 + $0x10] sm:$0xff]
  %v1243 = vld [vmem:[#allocation2 + $0x18] sm:$0xff]
  %v1244 = vld [vmem:[#allocation2 + $0x20] sm:$0xff]
  %v1245 = vld [vmem:[#allocation2 + $0x28] sm:$0xff]
  %v1246 = vld [vmem:[#allocation2 + $0x30] sm:$0xff]
  %v1247 = vld [vmem:[#allocation2 + $0x38] sm:$0xff]
  %v1248 = vld [vmem:[#allocation2 + $0x40] sm:$0xff]
  %v1249 = vld [vmem:[#allocation2 + $0x48] sm:$0xff]
  %v1250 = vld [vmem:[#allocation2 + $0x50] sm:$0xff]
  %v1251 = vld [vmem:[#allocation2 + $0x58] sm:$0xff]
  %v1252 = vld [vmem:[#allocation2 + $0x60] sm:$0xff]
  %v1253 = vld [vmem:[#allocation2 + $0x68] sm:$0xff]
  %v1254 = vld [vmem:[#allocation2 + $0x70] sm:$0xff]
  %v1255 = vld [vmem:[#allocation2 + $0x78] sm:$0xff]
  %v1256 = vld [vmem:[#allocation2 + $0x80] sm:$0xff]
  %v1257 = vld [vmem:[#allocation2 + $0x88] sm:$0xff]
  %v1258 = vld [vmem:[#allocation2 + $0x90] sm:$0xff]
  %v1259 = vld [vmem:[#allocation2 + $0x98] sm:$0xff]
  %v1260 = vld [vmem:[#allocation2 + $0xa0] sm:$0xff]
  %v1261 = vld [vmem:[#allocation2 + $0xa8] sm:$0xff]
  %v1262 = vld [vmem:[#allocation2 + $0xb0] sm:$0xff]
  %v1263 = vld [vmem:[#allocation2 + $0xb8] sm:$0xff]
  %v1264 = vld [vmem:[#allocation2 + $0xc0] sm:$0xff]
  %v1265 = vld [vmem:[#allocation2 + $0xc8] sm:$0xff]
  %v1266 = vld [vmem:[#allocation2 + $0xd0] sm:$0xff]
  %v1267 = vld [vmem:[#allocation2 + $0xd8] sm:$0xff]
  %v1268 = vld [vmem:[#allocation2 + $0xe0] sm:$0xff]
  %v1269 = vld [vmem:[#allocation2 + $0xe8] sm:$0xff]
  %v1270 = vld [vmem:[#allocation2 + $0xf0] sm:$0xff]
  %v1271 = vld [vmem:[#allocation2 + $0xf8] sm:$0xff]
  %v1272 = vld [vmem:[#allocation2 + $0x100] sm:$0xff]
  %v1273 = vld [vmem:[#allocation2 + $0x108] sm:$0xff]
  %v1274 = vld [vmem:[#allocation2 + $0x110] sm:$0xff]
  %v1275 = vld [vmem:[#allocation2 + $0x118] sm:$0xff]
  %v1276 = vld [vmem:[#allocation2 + $0x120] sm:$0xff]
  %v1277 = vld [vmem:[#allocation2 + $0x128] sm:$0xff]
  %v1278 = vld [vmem:[#allocation2 + $0x130] sm:$0xff]
  %v1279 = vld [vmem:[#allocation2 + $0x138] sm:$0xff]
  %v1280 = vld [vmem:[#allocation2 + $0x140] sm:$0xff]
  %v1281 = vld [vmem:[#allocation2 + $0x148] sm:$0xff]
  %v1282 = vld [vmem:[#allocation2 + $0x150] sm:$0xff]
  %v1283 = vld [vmem:[#allocation2 + $0x158] sm:$0xff]
  %v1284 = vld [vmem:[#allocation2 + $0x160] sm:$0xff]
  %v1285 = vld [vmem:[#allocation2 + $0x168] sm:$0xff]
  %v1286 = vld [vmem:[#allocation2 + $0x170] sm:$0xff]
  %v1287 = vld [vmem:[#allocation2 + $0x178] sm:$0xff]
  %v1288 = vld [vmem:[#allocation2 + $0x180] sm:$0xff]
  %v1289 = vld [vmem:[#allocation2 + $0x188] sm:$0xff]
  %v1290 = vld [vmem:[#allocation2 + $0x190] sm:$0xff]
  %v1291 = vld [vmem:[#allocation2 + $0x198] sm:$0xff]
  %v1292 = vld [vmem:[#allocation2 + $0x1a0] sm:$0xff]
  %v1293 = vld [vmem:[#allocation2 + $0x1a8] sm:$0xff]
  %v1294 = vld [vmem:[#allocation2 + $0x1b0] sm:$0xff]
  %v1295 = vld [vmem:[#allocation2 + $0x1b8] sm:$0xff]
  %v1296 = vld [vmem:[#allocation2 + $0x1c0] sm:$0xff]
  %v1297 = vld [vmem:[#allocation2 + $0x1c8] sm:$0xff]
  %v1298 = vld [vmem:[#allocation2 + $0x1d0] sm:$0xff]
  %v1299 = vld [vmem:[#allocation2 + $0x1d8] sm:$0xff]
  %v1300 = vld [vmem:[#allocation2 + $0x1e0] sm:$0xff]
  %v1301 = vld [vmem:[#allocation2 + $0x1e8] sm:$0xff]
  %v1302 = vld [vmem:[#allocation2 + $0x1f0] sm:$0xff]
  %v1303 = vld [vmem:[#allocation2 + $0x1f8] sm:$0xff]
  %1305 = vset.pattern.permute.xlu0 0
  %1306 = vperm.xlu0 %1305, %v995
  %v1307 = vpop.permute.xlu0 %1306
  %1309 = vmatpush.msra.mxu0 %v1300
  %1310 = vmatpush.msra.mxu0 %v1296
  %1311 = vmatpush.msra.mxu0 %v1292
  %1312 = vmatpush.msra.mxu0 %v1288
  %1313 = vmatpush.msra.mxu0 %v1284
  %1314 = vmatpush.msra.mxu0 %v1280
  %1315 = vmatpush.msra.mxu0 %v1276
  %1316 = vmatpush.msra.mxu0 %v1272
  %1317 = vmatpush.msra.mxu0 %v1268
  %1318 = vmatpush.msra.mxu0 %v1264
  %1319 = vmatpush.msra.mxu0 %v1260
  %1320 = vmatpush.msra.mxu0 %v1256
  %1321 = vmatpush.msra.mxu0 %v1252
  %1322 = vmatpush.msra.mxu0 %v1248
  %1323 = vmatpush.msra.mxu0 %v1244
  %1324 = vmatpush.msra.mxu0 %v1240
  %1325 = vmatmul.f32.gmra.mxu0 %v993
  %v1326 = vpop.f32.mrf.mxu0
  %v1327 = vadd.f32 %v1307, %v1326
  %1328 = vdwg.mxu0
  %1329 = vmatpush.msra.mxu0 %v1301
  %1330 = vmatpush.msra.mxu0 %v1297
  %1331 = vmatpush.msra.mxu0 %v1293
  %1332 = vmatpush.msra.mxu0 %v1289
  %1333 = vmatpush.msra.mxu0 %v1285
  %1334 = vmatpush.msra.mxu0 %v1281
  %1335 = vmatpush.msra.mxu0 %v1277
  %1336 = vmatpush.msra.mxu0 %v1273
  %1337 = vmatpush.msra.mxu0 %v1269
  %1338 = vmatpush.msra.mxu0 %v1265
  %1339 = vmatpush.msra.mxu0 %v1261
  %1340 = vmatpush.msra.mxu0 %v1257
  %1341 = vmatpush.msra.mxu0 %v1253
  %1342 = vmatpush.msra.mxu0 %v1249
  %1343 = vmatpush.msra.mxu0 %v1245
  %1344 = vmatpush.msra.mxu0 %v1241
  %1345 = vmatmul.f32.gmra.mxu0 %v993
  %v1346 = vpop.f32.mrf.mxu0
  %v1347 = vadd.f32 %v1307, %v1346
  %1348 = vdwg.mxu0
  %1349 = vmatpush.msra.mxu0 %v1302
  %1350 = vmatpush.msra.mxu0 %v1298
  %1351 = vmatpush.msra.mxu0 %v1294
  %1352 = vmatpush.msra.mxu0 %v1290
  %1353 = vmatpush.msra.mxu0 %v1286
  %1354 = vmatpush.msra.mxu0 %v1282
  %1355 = vmatpush.msra.mxu0 %v1278
  %1356 = vmatpush.msra.mxu0 %v1274
  %1357 = vmatpush.msra.mxu0 %v1270
  %1358 = vmatpush.msra.mxu0 %v1266
  %1359 = vmatpush.msra.mxu0 %v1262
  %1360 = vmatpush.msra.mxu0 %v1258
  %1361 = vmatpush.msra.mxu0 %v1254
  %1362 = vmatpush.msra.mxu0 %v1250
  %1363 = vmatpush.msra.mxu0 %v1246
  %1364 = vmatpush.msra.mxu0 %v1242
  %1365 = vmatmul.f32.gmra.mxu0 %v993
  %v1366 = vpop.f32.mrf.mxu0
  %v1367 = vadd.f32 %v1307, %v1366
  %1368 = vdwg.mxu0
  %1369 = vmatpush.msra.mxu0 %v1303
  %1370 = vmatpush.msra.mxu0 %v1299
  %1371 = vmatpush.msra.mxu0 %v1295
  %1372 = vmatpush.msra.mxu0 %v1291
  %1373 = vmatpush.msra.mxu0 %v1287
  %1374 = vmatpush.msra.mxu0 %v1283
  %1375 = vmatpush.msra.mxu0 %v1279
  %1376 = vmatpush.msra.mxu0 %v1275
  %1377 = vmatpush.msra.mxu0 %v1271
  %1378 = vmatpush.msra.mxu0 %v1267
  %1379 = vmatpush.msra.mxu0 %v1263
  %1380 = vmatpush.msra.mxu0 %v1259
  %1381 = vmatpush.msra.mxu0 %v1255
  %1382 = vmatpush.msra.mxu0 %v1251
  %1383 = vmatpush.msra.mxu0 %v1247
  %1384 = vmatpush.msra.mxu0 %v1243
  %1385 = vmatmul.f32.gmra.mxu0 %v993
  %v1386 = vpop.f32.mrf.mxu0
  %v1387 = vadd.f32 %v1307, %v1386
  %1388 = vdwg.mxu0
  %s1389 = scalar_lea.vmem %s4, 8
  %v1390 = vld [vmem:[%s1389] sm:$0xff]
  %s1391 = scalar_lea.vmem %s5, 8
  %v1392 = vld [vmem:[%s1391] sm:$0xff]
  %v1393 = vadd.f32 %v1327, %v1347
  %v1394 = vadd.f32 %v1393, %v1367
  %v1395 = vadd.f32 %v1394, %v1387
  %1396 = vadd.xlane.f32.xlu0 %v1395
  %v1397 = vpop.xlane.xlu0 %1396
  %v1398 = vmul.f32 %v1397, 0.001953125
  %v1399 = vmul.f32 %v1327, %v1327
  %v1400 = vmul.f32 %v1347, %v1347
  %v1401 = vmul.f32 %v1367, %v1367
  %v1402 = vmul.f32 %v1387, %v1387
  %v1403 = vadd.f32 %v1399, %v1400
  %v1404 = vadd.f32 %v1403, %v1401
  %v1405 = vadd.f32 %v1404, %v1402
  %1406 = vadd.xlane.f32.xlu0 %v1405
  %v1407 = vpop.xlane.xlu0 %1406
  %v1408 = vmul.f32 %v1407, 0.001953125
  %v1409 = vmul.f32 %v1398, %v1398
  %v1410 = vsub.f32 %v1408, %v1409
  %v1411 = vmax.f32 %v1410, 0.0
  %v1412 = vadd.f32 %v1411, 1e-05
  %v1413 = vrsqrt.pop %v1412
  %v1414 = vmul.f32 %v1413, %v1412
  %v1415 = vmul.f32 %v1414, %v1413
  %v1416 = vmul.f32 0.5, %v1415
  %v1417 = vsub.f32 1.5, %v1416
  %v1418 = vmul.f32 %v1413, %v1417
  %vm1419 = vweird.f32 %v1412
  %vm1420 = vweird.f32 %v1413
  %vm1421 = vmor %vm1419, %vm1420
  %v1422 = vsel %vm1421, %v1413, %v1418
  %v1423 = vmul.f32 %v1390, %v1422
  %v1424 = vmul.f32 %v1398, %v1423
  %v1425 = vsub.f32 %v1392, %v1424
  %1427 = vset.pattern.permute.xlu0 0
  %1428 = vperm.xlu0 %1427, %v1423
  %v1429 = vpop.permute.xlu0 %1428
  %v1431 = vmul.f32 %v1327, %v1429
  %v1432 = vmul.f32 %v1347, %v1429
  %v1433 = vmul.f32 %v1367, %v1429
  %v1434 = vmul.f32 %v1387, %v1429
  %1436 = vset.pattern.permute.xlu0 0
  %1437 = vperm.xlu0 %1436, %v1425
  %v1438 = vpop.permute.xlu0 %1437
  %v1440 = vadd.f32 %v1431, %v1438
  %v1441 = vadd.f32 %v1432, %v1438
  %v1442 = vadd.f32 %v1433, %v1438
  %v1443 = vadd.f32 %v1434, %v1438
  %v1444 = vmax.f32 %v1440, 0.0
  %v1445 = vmax.f32 %v1441, 0.0
  %v1446 = vmax.f32 %v1442, 0.0
  %v1447 = vmax.f32 %v1443, 0.0
  %s1448 = scalar_lea.vmem %s6, 8
  %v1449 = vld [vmem:[%s1448] sm:$0xff]
  %s1450 = scalar_lea.vmem %s7, 8
  %v1451 = vld [vmem:[%s1450] sm:$0xff]
  %1452 = vrot.lane.b32.xlu0 %v1444, 17
  %v1453 = vpop.permute.xlu0 %1452
  %1454 = vrot.lane.b32.xlu0 %v1445, 17
  %v1455 = vpop.permute.xlu0 %1454
  %1456 = vrot.lane.b32.xlu0 %v1446, 17
  %v1457 = vpop.permute.xlu0 %1456
  %1458 = vrot.lane.b32.xlu0 %v1447, 17
  %v1459 = vpop.permute.xlu0 %1458
  %v1460 = vsel %vm79, %v1457, %v1459
  %v1461 = vsel %vm79, %v1455, %v1457
  %v1462 = vsel %vm79, %v1453, %v1455
  %v1463 = vsel %vm79, %v1459, %v1453
  %v1464 = vld [vmem:[%s1] ss:$8 sm:$0xf]
  %v1466 = vperm.slane %v1464, 0
  %v1467 = vperm.slane %v1464, 1
  %v1468 = vperm.slane %v1464, 2
  %v1469 = vperm.slane %v1464, 3
  %v1474 = vmul.f32 %v1463, %v1466
  %v1475 = vmul.f32 %v1462, %v1467
  %v1476 = vmul.f32 %v1461, %v1468
  %v1477 = vmul.f32 %v1460, %v1469
  %1478 = vst [vmem:[#allocation2] sm:$0xff] %v1474
  %1479 = vst [vmem:[#allocation2 + $0x8] sm:$0xff] %v1475
  %1480 = vst [vmem:[#allocation2 + $0x10] sm:$0xff] %v1476
  %1481 = vst [vmem:[#allocation2 + $0x18] sm:$0xff] %v1477
  %1482 = vrot.lane.b32.xlu0 %v1444, 16
  %v1483 = vpop.permute.xlu0 %1482
  %1484 = vrot.lane.b32.xlu0 %v1445, 16
  %v1485 = vpop.permute.xlu0 %1484
  %1486 = vrot.lane.b32.xlu0 %v1446, 16
  %v1487 = vpop.permute.xlu0 %1486
  %1488 = vrot.lane.b32.xlu0 %v1447, 16
  %v1489 = vpop.permute.xlu0 %1488
  %v1490 = vsel %vm110, %v1487, %v1489
  %v1491 = vsel %vm110, %v1485, %v1487
  %v1492 = vsel %vm110, %v1483, %v1485
  %v1493 = vsel %vm110, %v1489, %v1483
  %v1494 = vld [vmem:[%s115] ss:$8 sm:$0xf]
  %v1496 = vperm.slane %v1494, 0
  %v1497 = vperm.slane %v1494, 1
  %v1498 = vperm.slane %v1494, 2
  %v1499 = vperm.slane %v1494, 3
  %v1504 = vmul.f32 %v1493, %v1496
  %v1505 = vmul.f32 %v1492, %v1497
  %v1506 = vmul.f32 %v1491, %v1498
  %v1507 = vmul.f32 %v1490, %v1499
  %1508 = vst [vmem:[#allocation2 + $0x20] sm:$0xff] %v1504
  %1509 = vst [vmem:[#allocation2 + $0x28] sm:$0xff] %v1505
  %1510 = vst [vmem:[#allocation2 + $0x30] sm:$0xff] %v1506
  %1511 = vst [vmem:[#allocation2 + $0x38] sm:$0xff] %v1507
  %1512 = vrot.lane.b32.xlu0 %v1444, 15
  %v1513 = vpop.permute.xlu0 %1512
  %1514 = vrot.lane.b32.xlu0 %v1445, 15
  %v1515 = vpop.permute.xlu0 %1514
  %1516 = vrot.lane.b32.xlu0 %v1446, 15
  %v1517 = vpop.permute.xlu0 %1516
  %1518 = vrot.lane.b32.xlu0 %v1447, 15
  %v1519 = vpop.permute.xlu0 %1518
  %v1520 = vsel %vm142, %v1517, %v1519
  %v1521 = vsel %vm142, %v1515, %v1517
  %v1522 = vsel %vm142, %v1513, %v1515
  %v1523 = vsel %vm142, %v1519, %v1513
  %v1524 = vld [vmem:[%s147] ss:$8 sm:$0xf]
  %v1526 = vperm.slane %v1524, 0
  %v1527 = vperm.slane %v1524, 1
  %v1528 = vperm.slane %v1524, 2
  %v1529 = vperm.slane %v1524, 3
  %v1534 = vmul.f32 %v1523, %v1526
  %v1535 = vmul.f32 %v1522, %v1527
  %v1536 = vmul.f32 %v1521, %v1528
  %v1537 = vmul.f32 %v1520, %v1529
  %1538 = vst [vmem:[#allocation2 + $0x40] sm:$0xff] %v1534
  %1539 = vst [vmem:[#allocation2 + $0x48] sm:$0xff] %v1535
  %1540 = vst [vmem:[#allocation2 + $0x50] sm:$0xff] %v1536
  %1541 = vst [vmem:[#allocation2 + $0x58] sm:$0xff] %v1537
  %1542 = vrot.lane.b32.xlu0 %v1444, 1
  %v1543 = vpop.permute.xlu0 %1542
  %1544 = vrot.lane.b32.xlu0 %v1445, 1
  %v1545 = vpop.permute.xlu0 %1544
  %1546 = vrot.lane.b32.xlu0 %v1446, 1
  %v1547 = vpop.permute.xlu0 %1546
  %1548 = vrot.lane.b32.xlu0 %v1447, 1
  %v1549 = vpop.permute.xlu0 %1548
  %v1550 = vsel %vm174, %v1547, %v1549
  %v1551 = vsel %vm174, %v1545, %v1547
  %v1552 = vsel %vm174, %v1543, %v1545
  %v1553 = vsel %vm174, %v1549, %v1543
  %v1554 = vld [vmem:[%s179] ss:$8 sm:$0xf]
  %v1556 = vperm.slane %v1554, 0
  %v1557 = vperm.slane %v1554, 1
  %v1558 = vperm.slane %v1554, 2
  %v1559 = vperm.slane %v1554, 3
  %v1564 = vmul.f32 %v1553, %v1556
  %v1565 = vmul.f32 %v1552, %v1557
  %v1566 = vmul.f32 %v1551, %v1558
  %v1567 = vmul.f32 %v1550, %v1559
  %1568 = vst [vmem:[#allocation2 + $0x60] sm:$0xff] %v1564
  %1569 = vst [vmem:[#allocation2 + $0x68] sm:$0xff] %v1565
  %1570 = vst [vmem:[#allocation2 + $0x70] sm:$0xff] %v1566
  %1571 = vst [vmem:[#allocation2 + $0x78] sm:$0xff] %v1567
  %1572 = vst [vmem:[#allocation2 + $0x80] sm:$0xff] %v1444
  %1573 = vst [vmem:[#allocation2 + $0x88] sm:$0xff] %v1445
  %1574 = vst [vmem:[#allocation2 + $0x90] sm:$0xff] %v1446
  %1575 = vst [vmem:[#allocation2 + $0x98] sm:$0xff] %v1447
  %1576 = vrot.lane.b32.xlu0 %v1444, 127
  %v1577 = vpop.permute.xlu0 %1576
  %1578 = vrot.lane.b32.xlu0 %v1445, 127
  %v1579 = vpop.permute.xlu0 %1578
  %1580 = vrot.lane.b32.xlu0 %v1446, 127
  %v1581 = vpop.permute.xlu0 %1580
  %1582 = vrot.lane.b32.xlu0 %v1447, 127
  %v1583 = vpop.permute.xlu0 %1582
  %v1584 = vsel %vm210, %v1581, %v1583
  %v1585 = vsel %vm210, %v1579, %v1581
  %v1586 = vsel %vm210, %v1577, %v1579
  %v1587 = vsel %vm210, %v1583, %v1577
  %v1588 = vld [vmem:[%s215] ss:$8 sm:$0xf]
  %v1590 = vperm.slane %v1588, 0
  %v1591 = vperm.slane %v1588, 1
  %v1592 = vperm.slane %v1588, 2
  %v1593 = vperm.slane %v1588, 3
  %v1598 = vmul.f32 %v1586, %v1590
  %v1599 = vmul.f32 %v1585, %v1591
  %v1600 = vmul.f32 %v1584, %v1592
  %v1601 = vmul.f32 %v1587, %v1593
  %1602 = vst [vmem:[#allocation2 + $0xa0] sm:$0xff] %v1598
  %1603 = vst [vmem:[#allocation2 + $0xa8] sm:$0xff] %v1599
  %1604 = vst [vmem:[#allocation2 + $0xb0] sm:$0xff] %v1600
  %1605 = vst [vmem:[#allocation2 + $0xb8] sm:$0xff] %v1601
  %1606 = vrot.lane.b32.xlu0 %v1444, 113
  %v1607 = vpop.permute.xlu0 %1606
  %1608 = vrot.lane.b32.xlu0 %v1445, 113
  %v1609 = vpop.permute.xlu0 %1608
  %1610 = vrot.lane.b32.xlu0 %v1446, 113
  %v1611 = vpop.permute.xlu0 %1610
  %1612 = vrot.lane.b32.xlu0 %v1447, 113
  %v1613 = vpop.permute.xlu0 %1612
  %v1614 = vsel %vm242, %v1611, %v1613
  %v1615 = vsel %vm242, %v1609, %v1611
  %v1616 = vsel %vm242, %v1607, %v1609
  %v1617 = vsel %vm242, %v1613, %v1607
  %v1618 = vld [vmem:[%s247] ss:$8 sm:$0xf]
  %v1620 = vperm.slane %v1618, 0
  %v1621 = vperm.slane %v1618, 1
  %v1622 = vperm.slane %v1618, 2
  %v1623 = vperm.slane %v1618, 3
  %v1628 = vmul.f32 %v1616, %v1620
  %v1629 = vmul.f32 %v1615, %v1621
  %v1630 = vmul.f32 %v1614, %v1622
  %v1631 = vmul.f32 %v1617, %v1623
  %1632 = vst [vmem:[#allocation2 + $0xc0] sm:$0xff] %v1628
  %1633 = vst [vmem:[#allocation2 + $0xc8] sm:$0xff] %v1629
  %1634 = vst [vmem:[#allocation2 + $0xd0] sm:$0xff] %v1630
  %1635 = vst [vmem:[#allocation2 + $0xd8] sm:$0xff] %v1631
  %1636 = vrot.lane.b32.xlu0 %v1444, 112
  %v1637 = vpop.permute.xlu0 %1636
  %1638 = vrot.lane.b32.xlu0 %v1445, 112
  %v1639 = vpop.permute.xlu0 %1638
  %1640 = vrot.lane.b32.xlu0 %v1446, 112
  %v1641 = vpop.permute.xlu0 %1640
  %1642 = vrot.lane.b32.xlu0 %v1447, 112
  %v1643 = vpop.permute.xlu0 %1642
  %v1644 = vsel %vm274, %v1641, %v1643
  %v1645 = vsel %vm274, %v1639, %v1641
  %v1646 = vsel %vm274, %v1637, %v1639
  %v1647 = vsel %vm274, %v1643, %v1637
  %v1648 = vld [vmem:[%s279] ss:$8 sm:$0xf]
  %v1650 = vperm.slane %v1648, 0
  %v1651 = vperm.slane %v1648, 1
  %v1652 = vperm.slane %v1648, 2
  %v1653 = vperm.slane %v1648, 3
  %v1658 = vmul.f32 %v1646, %v1650
  %v1659 = vmul.f32 %v1645, %v1651
  %v1660 = vmul.f32 %v1644, %v1652
  %v1661 = vmul.f32 %v1647, %v1653
  %1662 = vst [vmem:[#allocation2 + $0xe0] sm:$0xff] %v1658
  %1663 = vst [vmem:[#allocation2 + $0xe8] sm:$0xff] %v1659
  %1664 = vst [vmem:[#allocation2 + $0xf0] sm:$0xff] %v1660
  %1665 = vst [vmem:[#allocation2 + $0xf8] sm:$0xff] %v1661
  %1666 = vrot.lane.b32.xlu0 %v1444, 111
  %v1667 = vpop.permute.xlu0 %1666
  %1668 = vrot.lane.b32.xlu0 %v1445, 111
  %v1669 = vpop.permute.xlu0 %1668
  %1670 = vrot.lane.b32.xlu0 %v1446, 111
  %v1671 = vpop.permute.xlu0 %1670
  %1672 = vrot.lane.b32.xlu0 %v1447, 111
  %v1673 = vpop.permute.xlu0 %1672
  %v1674 = vsel %vm306, %v1671, %v1673
  %v1675 = vsel %vm306, %v1669, %v1671
  %v1676 = vsel %vm306, %v1667, %v1669
  %v1677 = vsel %vm306, %v1673, %v1667
  %v1678 = vld [vmem:[%s311] ss:$8 sm:$0xf]
  %v1680 = vperm.slane %v1678, 0
  %v1681 = vperm.slane %v1678, 1
  %v1682 = vperm.slane %v1678, 2
  %v1683 = vperm.slane %v1678, 3
  %v1688 = vmul.f32 %v1676, %v1680
  %v1689 = vmul.f32 %v1675, %v1681
  %v1690 = vmul.f32 %v1674, %v1682
  %v1691 = vmul.f32 %v1677, %v1683
  %1692 = vst [vmem:[#allocation2 + $0x100] sm:$0xff] %v1688
  %1693 = vst [vmem:[#allocation2 + $0x108] sm:$0xff] %v1689
  %1694 = vst [vmem:[#allocation2 + $0x110] sm:$0xff] %v1690
  %1695 = vst [vmem:[#allocation2 + $0x118] sm:$0xff] %v1691
  %v1696 = vld [vmem:[#allocation2] sm:$0xff]
  %v1697 = vld [vmem:[#allocation2 + $0x8] sm:$0xff]
  %v1698 = vld [vmem:[#allocation2 + $0x10] sm:$0xff]
  %v1699 = vld [vmem:[#allocation2 + $0x18] sm:$0xff]
  %v1700 = vld [vmem:[#allocation2 + $0x20] sm:$0xff]
  %v1701 = vld [vmem:[#allocation2 + $0x28] sm:$0xff]
  %v1702 = vld [vmem:[#allocation2 + $0x30] sm:$0xff]
  %v1703 = vld [vmem:[#allocation2 + $0x38] sm:$0xff]
  %v1704 = vld [vmem:[#allocation2 + $0x40] sm:$0xff]
  %v1705 = vld [vmem:[#allocation2 + $0x48] sm:$0xff]
  %v1706 = vld [vmem:[#allocation2 + $0x50] sm:$0xff]
  %v1707 = vld [vmem:[#allocation2 + $0x58] sm:$0xff]
  %v1708 = vld [vmem:[#allocation2 + $0x60] sm:$0xff]
  %v1709 = vld [vmem:[#allocation2 + $0x68] sm:$0xff]
  %v1710 = vld [vmem:[#allocation2 + $0x70] sm:$0xff]
  %v1711 = vld [vmem:[#allocation2 + $0x78] sm:$0xff]
  %v1712 = vld [vmem:[#allocation2 + $0x80] sm:$0xff]
  %v1713 = vld [vmem:[#allocation2 + $0x88] sm:$0xff]
  %v1714 = vld [vmem:[#allocation2 + $0x90] sm:$0xff]
  %v1715 = vld [vmem:[#allocation2 + $0x98] sm:$0xff]
  %v1716 = vld [vmem:[#allocation2 + $0xa0] sm:$0xff]
  %v1717 = vld [vmem:[#allocation2 + $0xa8] sm:$0xff]
  %v1718 = vld [vmem:[#allocation2 + $0xb0] sm:$0xff]
  %v1719 = vld [vmem:[#allocation2 + $0xb8] sm:$0xff]
  %v1720 = vld [vmem:[#allocation2 + $0xc0] sm:$0xff]
  %v1721 = vld [vmem:[#allocation2 + $0xc8] sm:$0xff]
  %v1722 = vld [vmem:[#allocation2 + $0xd0] sm:$0xff]
  %v1723 = vld [vmem:[#allocation2 + $0xd8] sm:$0xff]
  %v1724 = vld [vmem:[#allocation2 + $0xe0] sm:$0xff]
  %v1725 = vld [vmem:[#allocation2 + $0xe8] sm:$0xff]
  %v1726 = vld [vmem:[#allocation2 + $0xf0] sm:$0xff]
  %v1727 = vld [vmem:[#allocation2 + $0xf8] sm:$0xff]
  %v1728 = vld [vmem:[#allocation2 + $0x100] sm:$0xff]
  %v1729 = vld [vmem:[#allocation2 + $0x108] sm:$0xff]
  %v1730 = vld [vmem:[#allocation2 + $0x110] sm:$0xff]
  %v1731 = vld [vmem:[#allocation2 + $0x118] sm:$0xff]
  %v1732 = vld [vmem:[#allocation2 + $0x120] sm:$0xff]
  %v1733 = vld [vmem:[#allocation2 + $0x128] sm:$0xff]
  %v1734 = vld [vmem:[#allocation2 + $0x130] sm:$0xff]
  %v1735 = vld [vmem:[#allocation2 + $0x138] sm:$0xff]
  %v1736 = vld [vmem:[#allocation2 + $0x140] sm:$0xff]
  %v1737 = vld [vmem:[#allocation2 + $0x148] sm:$0xff]
  %v1738 = vld [vmem:[#allocation2 + $0x150] sm:$0xff]
  %v1739 = vld [vmem:[#allocation2 + $0x158] sm:$0xff]
  %v1740 = vld [vmem:[#allocation2 + $0x160] sm:$0xff]
  %v1741 = vld [vmem:[#allocation2 + $0x168] sm:$0xff]
  %v1742 = vld [vmem:[#allocation2 + $0x170] sm:$0xff]
  %v1743 = vld [vmem:[#allocation2 + $0x178] sm:$0xff]
  %v1744 = vld [vmem:[#allocation2 + $0x180] sm:$0xff]
  %v1745 = vld [vmem:[#allocation2 + $0x188] sm:$0xff]
  %v1746 = vld [vmem:[#allocation2 + $0x190] sm:$0xff]
  %v1747 = vld [vmem:[#allocation2 + $0x198] sm:$0xff]
  %v1748 = vld [vmem:[#allocation2 + $0x1a0] sm:$0xff]
  %v1749 = vld [vmem:[#allocation2 + $0x1a8] sm:$0xff]
  %v1750 = vld [vmem:[#allocation2 + $0x1b0] sm:$0xff]
  %v1751 = vld [vmem:[#allocation2 + $0x1b8] sm:$0xff]
  %v1752 = vld [vmem:[#allocation2 + $0x1c0] sm:$0xff]
  %v1753 = vld [vmem:[#allocation2 + $0x1c8] sm:$0xff]
  %v1754 = vld [vmem:[#allocation2 + $0x1d0] sm:$0xff]
  %v1755 = vld [vmem:[#allocation2 + $0x1d8] sm:$0xff]
  %v1756 = vld [vmem:[#allocation2 + $0x1e0] sm:$0xff]
  %v1757 = vld [vmem:[#allocation2 + $0x1e8] sm:$0xff]
  %v1758 = vld [vmem:[#allocation2 + $0x1f0] sm:$0xff]
  %v1759 = vld [vmem:[#allocation2 + $0x1f8] sm:$0xff]
  %1761 = vset.pattern.permute.xlu0 0
  %1762 = vperm.xlu0 %1761, %v1451
  %v1763 = vpop.permute.xlu0 %1762
  %1765 = vmatpush.msra.mxu0 %v1756
  %1766 = vmatpush.msra.mxu0 %v1752
  %1767 = vmatpush.msra.mxu0 %v1748
  %1768 = vmatpush.msra.mxu0 %v1744
  %1769 = vmatpush.msra.mxu0 %v1740
  %1770 = vmatpush.msra.mxu0 %v1736
  %1771 = vmatpush.msra.mxu0 %v1732
  %1772 = vmatpush.msra.mxu0 %v1728
  %1773 = vmatpush.msra.mxu0 %v1724
  %1774 = vmatpush.msra.mxu0 %v1720
  %1775 = vmatpush.msra.mxu0 %v1716
  %1776 = vmatpush.msra.mxu0 %v1712
  %1777 = vmatpush.msra.mxu0 %v1708
  %1778 = vmatpush.msra.mxu0 %v1704
  %1779 = vmatpush.msra.mxu0 %v1700
  %1780 = vmatpush.msra.mxu0 %v1696
  %1781 = vmatmul.f32.gmra.mxu0 %v1449
  %v1782 = vpop.f32.mrf.mxu0
  %v1783 = vadd.f32 %v1763, %v1782
  %1784 = vdwg.mxu0
  %1785 = vmatpush.msra.mxu0 %v1757
  %1786 = vmatpush.msra.mxu0 %v1753
  %1787 = vmatpush.msra.mxu0 %v1749
  %1788 = vmatpush.msra.mxu0 %v1745
  %1789 = vmatpush.msra.mxu0 %v1741
  %1790 = vmatpush.msra.mxu0 %v1737
  %1791 = vmatpush.msra.mxu0 %v1733
  %1792 = vmatpush.msra.mxu0 %v1729
  %1793 = vmatpush.msra.mxu0 %v1725
  %1794 = vmatpush.msra.mxu0 %v1721
  %1795 = vmatpush.msra.mxu0 %v1717
  %1796 = vmatpush.msra.mxu0 %v1713
  %1797 = vmatpush.msra.mxu0 %v1709
  %1798 = vmatpush.msra.mxu0 %v1705
  %1799 = vmatpush.msra.mxu0 %v1701
  %1800 = vmatpush.msra.mxu0 %v1697
  %1801 = vmatmul.f32.gmra.mxu0 %v1449
  %v1802 = vpop.f32.mrf.mxu0
  %v1803 = vadd.f32 %v1763, %v1802
  %1804 = vdwg.mxu0
  %1805 = vmatpush.msra.mxu0 %v1758
  %1806 = vmatpush.msra.mxu0 %v1754
  %1807 = vmatpush.msra.mxu0 %v1750
  %1808 = vmatpush.msra.mxu0 %v1746
  %1809 = vmatpush.msra.mxu0 %v1742
  %1810 = vmatpush.msra.mxu0 %v1738
  %1811 = vmatpush.msra.mxu0 %v1734
  %1812 = vmatpush.msra.mxu0 %v1730
  %1813 = vmatpush.msra.mxu0 %v1726
  %1814 = vmatpush.msra.mxu0 %v1722
  %1815 = vmatpush.msra.mxu0 %v1718
  %1816 = vmatpush.msra.mxu0 %v1714
  %1817 = vmatpush.msra.mxu0 %v1710
  %1818 = vmatpush.msra.mxu0 %v1706
  %1819 = vmatpush.msra.mxu0 %v1702
  %1820 = vmatpush.msra.mxu0 %v1698
  %1821 = vmatmul.f32.gmra.mxu0 %v1449
  %v1822 = vpop.f32.mrf.mxu0
  %v1823 = vadd.f32 %v1763, %v1822
  %1824 = vdwg.mxu0
  %1825 = vmatpush.msra.mxu0 %v1759
  %1826 = vmatpush.msra.mxu0 %v1755
  %1827 = vmatpush.msra.mxu0 %v1751
  %1828 = vmatpush.msra.mxu0 %v1747
  %1829 = vmatpush.msra.mxu0 %v1743
  %1830 = vmatpush.msra.mxu0 %v1739
  %1831 = vmatpush.msra.mxu0 %v1735
  %1832 = vmatpush.msra.mxu0 %v1731
  %1833 = vmatpush.msra.mxu0 %v1727
  %1834 = vmatpush.msra.mxu0 %v1723
  %1835 = vmatpush.msra.mxu0 %v1719
  %1836 = vmatpush.msra.mxu0 %v1715
  %1837 = vmatpush.msra.mxu0 %v1711
  %1838 = vmatpush.msra.mxu0 %v1707
  %1839 = vmatpush.msra.mxu0 %v1703
  %1840 = vmatpush.msra.mxu0 %v1699
  %1841 = vmatmul.f32.gmra.mxu0 %v1449
  %v1842 = vpop.f32.mrf.mxu0
  %v1843 = vadd.f32 %v1763, %v1842
  %1844 = vdwg.mxu0
  %s1845 = scalar_lea.vmem %s8, 8
  %v1846 = vld [vmem:[%s1845] sm:$0xff]
  %s1847 = scalar_lea.vmem %s9, 8
  %v1848 = vld [vmem:[%s1847] sm:$0xff]
  %v1849 = vadd.f32 %v1783, %v1803
  %v1850 = vadd.f32 %v1849, %v1823
  %v1851 = vadd.f32 %v1850, %v1843
  %1852 = vadd.xlane.f32.xlu0 %v1851
  %v1853 = vpop.xlane.xlu0 %1852
  %v1854 = vmul.f32 %v1853, 0.001953125
  %v1855 = vmul.f32 %v1783, %v1783
  %v1856 = vmul.f32 %v1803, %v1803
  %v1857 = vmul.f32 %v1823, %v1823
  %v1858 = vmul.f32 %v1843, %v1843
  %v1859 = vadd.f32 %v1855, %v1856
  %v1860 = vadd.f32 %v1859, %v1857
  %v1861 = vadd.f32 %v1860, %v1858
  %1862 = vadd.xlane.f32.xlu0 %v1861
  %v1863 = vpop.xlane.xlu0 %1862
  %v1864 = vmul.f32 %v1863, 0.001953125
  %v1865 = vmul.f32 %v1854, %v1854
  %v1866 = vsub.f32 %v1864, %v1865
  %v1867 = vmax.f32 %v1866, 0.0
  %v1868 = vadd.f32 %v1867, 1e-05
  %v1869 = vrsqrt.pop %v1868
  %v1870 = vmul.f32 %v1869, %v1868
  %v1871 = vmul.f32 %v1870, %v1869
  %v1872 = vmul.f32 0.5, %v1871
  %v1873 = vsub.f32 1.5, %v1872
  %v1874 = vmul.f32 %v1869, %v1873
  %vm1875 = vweird.f32 %v1868
  %vm1876 = vweird.f32 %v1869
  %vm1877 = vmor %vm1875, %vm1876
  %v1878 = vsel %vm1877, %v1869, %v1874
  %v1879 = vmul.f32 %v1846, %v1878
  %v1880 = vmul.f32 %v1854, %v1879
  %v1881 = vsub.f32 %v1848, %v1880
  %1883 = vset.pattern.permute.xlu0 0
  %1884 = vperm.xlu0 %1883, %v1879
  %v1885 = vpop.permute.xlu0 %1884
  %v1887 = vmul.f32 %v1783, %v1885
  %v1888 = vmul.f32 %v1803, %v1885
  %v1889 = vmul.f32 %v1823, %v1885
  %v1890 = vmul.f32 %v1843, %v1885
  %1892 = vset.pattern.permute.xlu0 0
  %1893 = vperm.xlu0 %1892, %v1881
  %v1894 = vpop.permute.xlu0 %1893
  %v1896 = vadd.f32 %v1887, %v1894
  %v1897 = vadd.f32 %v1888, %v1894
  %v1898 = vadd.f32 %v1889, %v1894
  %v1899 = vadd.f32 %v1890, %v1894
  %v1900 = vadd.f32 %v988, %v1896
  %v1901 = vadd.f32 %v989, %v1897
  %v1902 = vadd.f32 %v990, %v1898
  %v1903 = vadd.f32 %v991, %v1899
  %v1904 = vmax.f32 %v1900, 0.0
  %v1905 = vmax.f32 %v1901, 0.0
  %v1906 = vmax.f32 %v1902, 0.0
  %v1907 = vmax.f32 %v1903, 0.0
  %1908 = vst [vmem:[%s10] sm:$0xff] %v1904
  %1909 = vst [vmem:[%s10 + $0x8] sm:$0xff] %v1905
  %1910 = vst [vmem:[%s10 + $0x10] sm:$0xff] %v1906
  %1911 = vst [vmem:[%s10 + $0x18] sm:$0xff] %v1907
  // Predicated region
  $region42: #{xnet_forward.1} parent=0 // pred_check
    _
  $region43: #{xnet_forward.1} parent=0 // pred_check_branch
    %1913 = sbr.rel (0) target = $region45
  $region44: #{xnet_forward.1} parent=0 // pred_region
    _
  $region45: #{xnet_forward.1} parent=0 // pred_fallthru
    _
  // Predicated region
  $region46: #{xnet_forward.1} parent=0 // pred_check
    _
  $region47: #{xnet_forward.1} parent=0 // pred_check_branch
    %1915 = sbr.rel (0) target = $region49
  $region48: #{xnet_forward.1} parent=0 // pred_region
    _
  $region49: #{xnet_forward.1} parent=0 // pred_fallthru
    _

</llo_original>
